<compile_context>
chip_gen: v5e
topology: v5e:2x2
jax: 0.10.0
libtpu: 0.0.40
codegen_flags: <defaults>
</compile_context>

<pallas_src>
import functools

import numpy as np
import jax
import jax.numpy as jnp
from jax.experimental import pallas as pl
from jax.experimental.pallas import tpu as pltpu

NEG_SLOPE = 0.01  # nn.LeakyReLU() default


def _leaky(x):
    return jnp.where(x > 0, x, NEG_SLOPE * x)


def _conv_out(n):                      # Conv2d(k=3, s=2, p=1) output size
    return (n - 1) // 2 + 1


def _round_up(n, m):
    return ((n + m - 1) // m) * m


# ------------------------------ Pallas kernel ------------------------------- #

def _disc_fused_kernel(p0_ref, w1_ref, b1_ref,
                       g2_ref, w2_ref, b2_ref,
                       g3_ref, w3_ref, b3_ref,
                       wl_ref, bl_ref, o_ref):
    """One batch element per grid step; every intermediate stays in VMEM."""
    # ---- conv1 + LeakyReLU: im2col done in jit glue -> one (rows, 32)@(32, DIM) matmul
    h1 = _leaky(jnp.dot(p0_ref[0], w1_ref[...],
                        preferred_element_type=jnp.float32) + b1_ref[...])
    h1 = h1.astype(jnp.bfloat16)

    # ---- conv2 / conv3 + LeakyReLU: 9 tiny batch-independent 0/1 gather matmuls
    #      build the (rows, 9*Cin) patch slab, then ONE fused weight matmul.
    def conv(h, g_ref, w_ref, b_ref):
        taps = [jnp.dot(g_ref[k], h, preferred_element_type=jnp.float32)
                for k in range(9)]                               # exact 0/1 gather
        patches = jnp.concatenate(taps, axis=-1).astype(jnp.bfloat16)
        y = jnp.dot(patches, w_ref[...], preferred_element_type=jnp.float32)
        return _leaky(y + b_ref[...])

    h2 = conv(h1, g2_ref, w2_ref, b2_ref).astype(jnp.bfloat16)  # (64, 2*DIM)
    h3 = conv(h2, g3_ref, w3_ref, b3_ref)                       # (16, 4*DIM) f32

    # ---- Linear(4*4*4*DIM, 1): elementwise mul + full reduce per batch element.
    acc = jnp.sum(h3 * wl_ref[...])                              # scalar
    res = (acc + bl_ref[...]).reshape(1, 1, 1)                   # (1, 1, 1)
    o_ref[...] = jnp.broadcast_to(res, o_ref.shape)              # lane-dense store


# ------------------------- one-time parameter prep -------------------------- #

def _gather_matrices(Hi, Wi, cols_pad, Ho, Wo, rows_pad):
    """Batch-independent 0/1 matrices G[k] so G[k] @ x picks tap k of every output
    pixel (rows/cols flattened h*W + w); zero rows/cols implement the conv padding
    and the tile-alignment padding."""
    G = np.zeros((9, rows_pad, cols_pad), np.float32)
    for oh in range(Ho):
        for ow in range(Wo):
            r = oh * Wo + ow
            for ki in range(3):
                for kj in range(3):
                    ih, iw = oh * 2 + ki - 1, ow * 2 + kj - 1
                    if 0 <= ih < Hi and 0 <= iw < Wi:
                        G[ki * 3 + kj, r, ih * Wi + iw] = 1.0
    return jnp.asarray(G, dtype=jnp.bfloat16)


def preprocess_params(params, H, W, DIM):
    """Hoisted, batch-independent layout conversion of PyTorch-layout parameters."""
    H1, W1 = _conv_out(H), _conv_out(W)          # 13, 13
    H2, W2 = _conv_out(H1), _conv_out(W1)        # 7, 7
    H3, W3 = _conv_out(H2), _conv_out(W2)        # 4, 4
    assert (H3, W3) == (4, 4), "Discriminator1 expects 4x4 features before Linear"

    R1P = _round_up(H1 * W1, 16)                 # 169 -> 176 (bf16 sublane tile)
    R2P = _round_up(H2 * W2, 16)                 # 49  -> 64
    K1P = _round_up(9 * 3, 32)                   # 27  -> 32

    def conv_w(w):                               # (Cout, Cin, 3, 3) -> (9*Cin, Cout)
        co, ci = w.shape[0], w.shape[1]
        return jnp.transpose(w, (2, 3, 1, 0)).reshape(9 * ci, co)

    w1 = jnp.pad(conv_w(params["w1"]), ((0, K1P - 27), (0, 0))).astype(jnp.bfloat16)
    b1 = params["b1"].reshape(1, DIM).astype(jnp.float32)
    w2 = conv_w(params["w2"]).astype(jnp.bfloat16)              # (9*DIM,   2*DIM)
    b2 = params["b2"].reshape(1, 2 * DIM).astype(jnp.float32)
    w3 = conv_w(params["w3"]).astype(jnp.bfloat16)              # (9*2*DIM, 4*DIM)
    b3 = params["b3"].reshape(1, 4 * DIM).astype(jnp.float32)

    g2 = _gather_matrices(H1, W1, R1P, H2, W2, R2P)             # (9, 64, 176) bf16
    g3 = _gather_matrices(H2, W2, R2P, H3, W3, H3 * W3)         # (9, 16, 64)  bf16

    # Linear weight: PyTorch flattens NCHW -> (c, h, w); rearrange to the kernel's
    # row=(h, w), col=c layout (kept f32; used elementwise, not on the MXU).
    wl = jnp.transpose(params["wl"].reshape(4 * DIM, H3, W3), (1, 2, 0))
    wl = wl.reshape(H3 * W3, 4 * DIM).astype(jnp.float32)       # (16, 4*DIM)
    bl = params["bl"].reshape(1, 1).astype(jnp.float32)

    return (w1, b1, g2, w2, b2, g3, w3, b3, wl, bl)


# ------------------------------- forward (jit) ------------------------------ #

def _im2col_k3s2p1(x_nhwc, rows_pad, k_pad):
    """im2col for Conv2d(k=3, s=2, p=1): returns (B, rows_pad, k_pad) bf16,
    rows in (h, w) order, cols ordered tap-major (k*C + c)."""
    B, H, W, C = x_nhwc.shape
    Ho, Wo = _conv_out(H), _conv_out(W)
    xp = jnp.pad(x_nhwc, ((0, 0), (1, 1), (1, 1), (0, 0)))
    cols = []
    for ki in range(3):
        for kj in range(3):
            sl = jax.lax.slice(xp, (0, ki, kj, 0),
                               (B, ki + 2 * (Ho - 1) + 1,
                                kj + 2 * (Wo - 1) + 1, C),
                               (1, 2, 2, 1))
            cols.append(sl)
    p = jnp.concatenate(cols, axis=-1).reshape(B, Ho * Wo, 9 * C)
    p = jnp.pad(p, ((0, 0), (0, rows_pad - Ho * Wo), (0, k_pad - 9 * C)))
    return p.astype(jnp.bfloat16)


def _full_spec(a):
    zeros = (0,) * a.ndim
    return pl.BlockSpec(a.shape, lambda b: zeros)   # resident, fetched once


@jax.jit
def discriminator1_forward(x_nchw, prep):
    (w1, b1, g2, w2, b2, g3, w3, b3, wl, bl) = prep
    B = x_nchw.shape[0]
    R1P, K1P = g2.shape[2], w1.shape[0]

    x = jnp.transpose(x_nchw, (0, 2, 3, 1))          # NCHW -> NHWC
    p0 = _im2col_k3s2p1(x, R1P, K1P)                 # (B, 176, 32) bf16

    out = pl.pallas_call(
        _disc_fused_kernel,
        out_shape=jax.ShapeDtypeStruct((B, 1, 128), jnp.float32),
        grid=(B,),
        in_specs=[pl.BlockSpec((1, R1P, K1P), lambda b: (b, 0, 0)),
                  _full_spec(w1), _full_spec(b1),
                  _full_spec(g2), _full_spec(w2), _full_spec(b2),
                  _full_spec(g3), _full_spec(w3), _full_spec(b3),
                  _full_spec(wl), _full_spec(bl)],
        out_specs=pl.BlockSpec((1, 1, 128), lambda b: (b, 0, 0)),
        compiler_params=pltpu.CompilerParams(
            dimension_semantics=("parallel",)),
    )(p0, w1, b1, g2, w2, b2, g3, w3, b3, wl, bl)
    return out[:, 0, :1]                             # (B, 1)


# ------------------------------ pure-JAX reference --------------------------- #

def _reference_forward(x_nchw, params):
    def conv(x, w, b):
        y = jax.lax.conv_general_dilated(
            x, w, window_strides=(2, 2), padding=((1, 1), (1, 1)),
            dimension_numbers=("NCHW", "OIHW", "NCHW"),
            precision=jax.lax.Precision.HIGHEST)
        return y + b[None, :, None, None]

    h = _leaky(conv(x_nchw, params["w1"], params["b1"]))
    h = _leaky(conv(h, params["w2"], params["b2"]))
    h = _leaky(conv(h, params["w3"], params["b3"]))
    flat = h.reshape(h.shape[0], -1)                 # NCHW flatten = (c, h, w)
    return flat @ params["wl"].T + params["bl"]


# ----------------------------------- main ------------------------------------ #

if __name__ == "__main__":
    # Small shapes consistent with the module: input 25x25 -> 13 -> 7 -> 4x4,
    # matching the 4*4*4*DIM flatten; DIM scaled down from 1875 to 16.
    B, DIM, H, W = 2, 16, 25, 25
    key = jax.random.PRNGKey(0)
    ks = jax.random.split(key, 9)

    params = {
        # PyTorch layouts: Conv2d (Cout, Cin, 3, 3); Linear (1, 4*4*4*DIM).
        "w1": jax.random.normal(ks[0], (DIM, 3, 3, 3), jnp.float32) * 0.05,
        "b1": jax.random.normal(ks[1], (DIM,), jnp.float32) * 0.05,
        "w2": jax.random.normal(ks[2], (2 * DIM, DIM, 3, 3), jnp.float32) * 0.05,
        "b2": jax.random.normal(ks[3], (2 * DIM,), jnp.float32) * 0.05,
        "w3": jax.random.normal(ks[4], (4 * DIM, 2 * DIM, 3, 3), jnp.float32) * 0.05,
        "b3": jax.random.normal(ks[5], (4 * DIM,), jnp.float32) * 0.05,
        "wl": jax.random.normal(ks[6], (1, 4 * 4 * 4 * DIM), jnp.float32) * 0.05,
        "bl": jax.random.normal(ks[7], (1,), jnp.float32) * 0.05,
    }
    x = jax.random.normal(ks[8], (B, 3, H, W), jnp.float32)

    prep = preprocess_params(params, H, W, DIM)      # one-time, batch-independent

    out = discriminator1_forward(x, prep)
    out = jax.block_until_ready(out)

    assert out.shape == (B, 1), out.shape
    assert out.dtype == jnp.float32
    assert bool(jnp.all(jnp.isfinite(out)))

    ref = _reference_forward(x, params)
    err = float(jnp.max(jnp.abs(out - ref)))
    # bf16 MXU operands with f32 accumulation -> slightly looser tolerance vs f32 ref.
    assert bool(jnp.allclose(out, ref, atol=2e-2, rtol=2e-2)), err

    print("KERNEL_OK")
</pallas_src>

<mosaic_0001>
module attributes {stable_mosaic.version = 11 : i64} {
  func.func @_disc_fused_kernel(%arg0: i32, %arg1: memref<1x176x32xbf16, #tpu.memory_space<vmem>>, %arg2: memref<32x16xbf16, #tpu.memory_space<vmem>>, %arg3: memref<1x16xf32, #tpu.memory_space<vmem>>, %arg4: memref<9x64x176xbf16, #tpu.memory_space<vmem>>, %arg5: memref<144x32xbf16, #tpu.memory_space<vmem>>, %arg6: memref<1x32xf32, #tpu.memory_space<vmem>>, %arg7: memref<9x16x64xbf16, #tpu.memory_space<vmem>>, %arg8: memref<288x64xbf16, #tpu.memory_space<vmem>>, %arg9: memref<1x64xf32, #tpu.memory_space<vmem>>, %arg10: memref<16x64xf32, #tpu.memory_space<vmem>>, %arg11: memref<1x1xf32, #tpu.memory_space<vmem>>, %arg12: memref<1x1x128xf32, #tpu.memory_space<vmem>>) attributes {dimension_semantics = [#tpu.dimension_semantics<parallel>], iteration_bounds = array<i64: 2>, scalar_prefetch = 0 : i64, scratch_operands = 0 : i64, tpu.core_type = #tpu.core_type<tc>, window_params = [{transform_indices = @transform_0, window_bounds = array<i64: 1, 176, 32>}, {pipeline_mode = #tpu.pipeline_mode<synchronous>, transform_indices = @transform_1, window_bounds = array<i64: 32, 16>}, {pipeline_mode = #tpu.pipeline_mode<synchronous>, transform_indices = @transform_2, window_bounds = array<i64: 1, 16>}, {pipeline_mode = #tpu.pipeline_mode<synchronous>, transform_indices = @transform_3, window_bounds = array<i64: 9, 64, 176>}, {pipeline_mode = #tpu.pipeline_mode<synchronous>, transform_indices = @transform_4, window_bounds = array<i64: 144, 32>}, {pipeline_mode = #tpu.pipeline_mode<synchronous>, transform_indices = @transform_5, window_bounds = array<i64: 1, 32>}, {pipeline_mode = #tpu.pipeline_mode<synchronous>, transform_indices = @transform_6, window_bounds = array<i64: 9, 16, 64>}, {pipeline_mode = #tpu.pipeline_mode<synchronous>, transform_indices = @transform_7, window_bounds = array<i64: 288, 64>}, {pipeline_mode = #tpu.pipeline_mode<synchronous>, transform_indices = @transform_8, window_bounds = array<i64: 1, 64>}, {pipeline_mode = #tpu.pipeline_mode<synchronous>, transform_indices = @transform_9, window_bounds = array<i64: 16, 64>}, {pipeline_mode = #tpu.pipeline_mode<synchronous>, transform_indices = @transform_10, window_bounds = array<i64: 1, 1>}, {transform_indices = @transform_11, window_bounds = array<i64: 1, 1, 128>}]} {
    %c0 = arith.constant 0 : index
    %c0_0 = arith.constant 0 : index
    %c0_1 = arith.constant 0 : index
    %0 = vector.load %arg1[%c0, %c0_0, %c0_1] : memref<1x176x32xbf16, #tpu.memory_space<vmem>>, vector<1x176x32xbf16>
    %1 = vector.shape_cast %0 : vector<1x176x32xbf16> to vector<176x32xbf16>
    %c0_2 = arith.constant 0 : index
    %c0_3 = arith.constant 0 : index
    %2 = vector.load %arg2[%c0_2, %c0_3] : memref<32x16xbf16, #tpu.memory_space<vmem>>, vector<32x16xbf16>
    %cst = arith.constant dense<0.000000e+00> : vector<176x16xf32>
    %3 = tpu.matmul %1, %2, %cst {dimension_numbers = #tpu.dot_dimension_numbers<[1], [0], [0], [1], [0, 0, 1, 1], [], []>} : vector<176x32xbf16>, vector<32x16xbf16>, vector<176x16xf32> -> vector<176x16xf32>
    %c0_4 = arith.constant 0 : index
    %c0_5 = arith.constant 0 : index
    %4 = vector.load %arg3[%c0_4, %c0_5] : memref<1x16xf32, #tpu.memory_space<vmem>>, vector<1x16xf32>
    %5 = vector.broadcast %4 : vector<1x16xf32> to vector<176x16xf32>
    %6 = arith.addf %3, %5 : vector<176x16xf32>
    %cst_6 = arith.constant 0.000000e+00 : f32
    %7 = vector.broadcast %cst_6 : f32 to vector<176x16xf32>
    %8 = arith.cmpf ogt, %6, %7 : vector<176x16xf32>
    %cst_7 = arith.constant 0.00999999977 : f32
    %9 = vector.broadcast %cst_7 : f32 to vector<176x16xf32>
    %10 = arith.mulf %9, %6 : vector<176x16xf32>
    %11 = arith.select %8, %6, %10 : vector<176x16xi1>, vector<176x16xf32>
    %12 = arith.truncf %11 : vector<176x16xf32> to vector<176x16xbf16>
    %c0_8 = arith.constant 0 : index
    %c0_9 = arith.constant 0 : index
    %c0_10 = arith.constant 0 : index
    %13 = vector.load %arg4[%c0_8, %c0_9, %c0_10] : memref<9x64x176xbf16, #tpu.memory_space<vmem>>, vector<1x64x176xbf16>
    %14 = vector.shape_cast %13 : vector<1x64x176xbf16> to vector<64x176xbf16>
    %cst_11 = arith.constant dense<0.000000e+00> : vector<64x16xf32>
    %15 = tpu.matmul %14, %12, %cst_11 {dimension_numbers = #tpu.dot_dimension_numbers<[1], [0], [0], [1], [0, 0, 1, 1], [], []>} : vector<64x176xbf16>, vector<176x16xbf16>, vector<64x16xf32> -> vector<64x16xf32>
    %c1 = arith.constant 1 : index
    %c0_12 = arith.constant 0 : index
    %c0_13 = arith.constant 0 : index
    %16 = vector.load %arg4[%c1, %c0_12, %c0_13] : memref<9x64x176xbf16, #tpu.memory_space<vmem>>, vector<1x64x176xbf16>
    %17 = vector.shape_cast %16 : vector<1x64x176xbf16> to vector<64x176xbf16>
    %cst_14 = arith.constant dense<0.000000e+00> : vector<64x16xf32>
    %18 = tpu.matmul %17, %12, %cst_14 {dimension_numbers = #tpu.dot_dimension_numbers<[1], [0], [0], [1], [0, 0, 1, 1], [], []>} : vector<64x176xbf16>, vector<176x16xbf16>, vector<64x16xf32> -> vector<64x16xf32>
    %c2 = arith.constant 2 : index
    %c0_15 = arith.constant 0 : index
    %c0_16 = arith.constant 0 : index
    %19 = vector.load %arg4[%c2, %c0_15, %c0_16] : memref<9x64x176xbf16, #tpu.memory_space<vmem>>, vector<1x64x176xbf16>
    %20 = vector.shape_cast %19 : vector<1x64x176xbf16> to vector<64x176xbf16>
    %cst_17 = arith.constant dense<0.000000e+00> : vector<64x16xf32>
    %21 = tpu.matmul %20, %12, %cst_17 {dimension_numbers = #tpu.dot_dimension_numbers<[1], [0], [0], [1], [0, 0, 1, 1], [], []>} : vector<64x176xbf16>, vector<176x16xbf16>, vector<64x16xf32> -> vector<64x16xf32>
    %c3 = arith.constant 3 : index
    %c0_18 = arith.constant 0 : index
    %c0_19 = arith.constant 0 : index
    %22 = vector.load %arg4[%c3, %c0_18, %c0_19] : memref<9x64x176xbf16, #tpu.memory_space<vmem>>, vector<1x64x176xbf16>
    %23 = vector.shape_cast %22 : vector<1x64x176xbf16> to vector<64x176xbf16>
    %cst_20 = arith.constant dense<0.000000e+00> : vector<64x16xf32>
    %24 = tpu.matmul %23, %12, %cst_20 {dimension_numbers = #tpu.dot_dimension_numbers<[1], [0], [0], [1], [0, 0, 1, 1], [], []>} : vector<64x176xbf16>, vector<176x16xbf16>, vector<64x16xf32> -> vector<64x16xf32>
    %c4 = arith.constant 4 : index
    %c0_21 = arith.constant 0 : index
    %c0_22 = arith.constant 0 : index
    %25 = vector.load %arg4[%c4, %c0_21, %c0_22] : memref<9x64x176xbf16, #tpu.memory_space<vmem>>, vector<1x64x176xbf16>
    %26 = vector.shape_cast %25 : vector<1x64x176xbf16> to vector<64x176xbf16>
    %cst_23 = arith.constant dense<0.000000e+00> : vector<64x16xf32>
    %27 = tpu.matmul %26, %12, %cst_23 {dimension_numbers = #tpu.dot_dimension_numbers<[1], [0], [0], [1], [0, 0, 1, 1], [], []>} : vector<64x176xbf16>, vector<176x16xbf16>, vector<64x16xf32> -> vector<64x16xf32>
    %c5 = arith.constant 5 : index
    %c0_24 = arith.constant 0 : index
    %c0_25 = arith.constant 0 : index
    %28 = vector.load %arg4[%c5, %c0_24, %c0_25] : memref<9x64x176xbf16, #tpu.memory_space<vmem>>, vector<1x64x176xbf16>
    %29 = vector.shape_cast %28 : vector<1x64x176xbf16> to vector<64x176xbf16>
    %cst_26 = arith.constant dense<0.000000e+00> : vector<64x16xf32>
    %30 = tpu.matmul %29, %12, %cst_26 {dimension_numbers = #tpu.dot_dimension_numbers<[1], [0], [0], [1], [0, 0, 1, 1], [], []>} : vector<64x176xbf16>, vector<176x16xbf16>, vector<64x16xf32> -> vector<64x16xf32>
    %c6 = arith.constant 6 : index
    %c0_27 = arith.constant 0 : index
    %c0_28 = arith.constant 0 : index
    %31 = vector.load %arg4[%c6, %c0_27, %c0_28] : memref<9x64x176xbf16, #tpu.memory_space<vmem>>, vector<1x64x176xbf16>
    %32 = vector.shape_cast %31 : vector<1x64x176xbf16> to vector<64x176xbf16>
    %cst_29 = arith.constant dense<0.000000e+00> : vector<64x16xf32>
    %33 = tpu.matmul %32, %12, %cst_29 {dimension_numbers = #tpu.dot_dimension_numbers<[1], [0], [0], [1], [0, 0, 1, 1], [], []>} : vector<64x176xbf16>, vector<176x16xbf16>, vector<64x16xf32> -> vector<64x16xf32>
    %c7 = arith.constant 7 : index
    %c0_30 = arith.constant 0 : index
    %c0_31 = arith.constant 0 : index
    %34 = vector.load %arg4[%c7, %c0_30, %c0_31] : memref<9x64x176xbf16, #tpu.memory_space<vmem>>, vector<1x64x176xbf16>
    %35 = vector.shape_cast %34 : vector<1x64x176xbf16> to vector<64x176xbf16>
    %cst_32 = arith.constant dense<0.000000e+00> : vector<64x16xf32>
    %36 = tpu.matmul %35, %12, %cst_32 {dimension_numbers = #tpu.dot_dimension_numbers<[1], [0], [0], [1], [0, 0, 1, 1], [], []>} : vector<64x176xbf16>, vector<176x16xbf16>, vector<64x16xf32> -> vector<64x16xf32>
    %c8 = arith.constant 8 : index
    %c0_33 = arith.constant 0 : index
    %c0_34 = arith.constant 0 : index
    %37 = vector.load %arg4[%c8, %c0_33, %c0_34] : memref<9x64x176xbf16, #tpu.memory_space<vmem>>, vector<1x64x176xbf16>
    %38 = vector.shape_cast %37 : vector<1x64x176xbf16> to vector<64x176xbf16>
    %cst_35 = arith.constant dense<0.000000e+00> : vector<64x16xf32>
    %39 = tpu.matmul %38, %12, %cst_35 {dimension_numbers = #tpu.dot_dimension_numbers<[1], [0], [0], [1], [0, 0, 1, 1], [], []>} : vector<64x176xbf16>, vector<176x16xbf16>, vector<64x16xf32> -> vector<64x16xf32>
    %40 = tpu.concatenate %15, %18, %21, %24, %27, %30, %33, %36, %39 in 1 : vector<64x16xf32>, vector<64x16xf32>, vector<64x16xf32>, vector<64x16xf32>, vector<64x16xf32>, vector<64x16xf32>, vector<64x16xf32>, vector<64x16xf32>, vector<64x16xf32> -> vector<64x144xf32>
    %41 = arith.truncf %40 : vector<64x144xf32> to vector<64x144xbf16>
    %c0_36 = arith.constant 0 : index
    %c0_37 = arith.constant 0 : index
    %42 = vector.load %arg5[%c0_36, %c0_37] : memref<144x32xbf16, #tpu.memory_space<vmem>>, vector<144x32xbf16>
    %cst_38 = arith.constant dense<0.000000e+00> : vector<64x32xf32>
    %43 = tpu.matmul %41, %42, %cst_38 {dimension_numbers = #tpu.dot_dimension_numbers<[1], [0], [0], [1], [0, 0, 1, 1], [], []>} : vector<64x144xbf16>, vector<144x32xbf16>, vector<64x32xf32> -> vector<64x32xf32>
    %c0_39 = arith.constant 0 : index
    %c0_40 = arith.constant 0 : index
    %44 = vector.load %arg6[%c0_39, %c0_40] : memref<1x32xf32, #tpu.memory_space<vmem>>, vector<1x32xf32>
    %45 = vector.broadcast %44 : vector<1x32xf32> to vector<64x32xf32>
    %46 = arith.addf %43, %45 : vector<64x32xf32>
    %cst_41 = arith.constant 0.000000e+00 : f32
    %47 = vector.broadcast %cst_41 : f32 to vector<64x32xf32>
    %48 = arith.cmpf ogt, %46, %47 : vector<64x32xf32>
    %cst_42 = arith.constant 0.00999999977 : f32
    %49 = vector.broadcast %cst_42 : f32 to vector<64x32xf32>
    %50 = arith.mulf %49, %46 : vector<64x32xf32>
    %51 = arith.select %48, %46, %50 : vector<64x32xi1>, vector<64x32xf32>
    %52 = arith.truncf %51 : vector<64x32xf32> to vector<64x32xbf16>
    %c0_43 = arith.constant 0 : index
    %c0_44 = arith.constant 0 : index
    %c0_45 = arith.constant 0 : index
    %53 = vector.load %arg7[%c0_43, %c0_44, %c0_45] : memref<9x16x64xbf16, #tpu.memory_space<vmem>>, vector<1x16x64xbf16>
    %54 = vector.shape_cast %53 : vector<1x16x64xbf16> to vector<16x64xbf16>
    %cst_46 = arith.constant dense<0.000000e+00> : vector<16x32xf32>
    %55 = tpu.matmul %54, %52, %cst_46 {dimension_numbers = #tpu.dot_dimension_numbers<[1], [0], [0], [1], [0, 0, 1, 1], [], []>} : vector<16x64xbf16>, vector<64x32xbf16>, vector<16x32xf32> -> vector<16x32xf32>
    %c1_47 = arith.constant 1 : index
    %c0_48 = arith.constant 0 : index
    %c0_49 = arith.constant 0 : index
    %56 = vector.load %arg7[%c1_47, %c0_48, %c0_49] : memref<9x16x64xbf16, #tpu.memory_space<vmem>>, vector<1x16x64xbf16>
    %57 = vector.shape_cast %56 : vector<1x16x64xbf16> to vector<16x64xbf16>
    %cst_50 = arith.constant dense<0.000000e+00> : vector<16x32xf32>
    %58 = tpu.matmul %57, %52, %cst_50 {dimension_numbers = #tpu.dot_dimension_numbers<[1], [0], [0], [1], [0, 0, 1, 1], [], []>} : vector<16x64xbf16>, vector<64x32xbf16>, vector<16x32xf32> -> vector<16x32xf32>
    %c2_51 = arith.constant 2 : index
    %c0_52 = arith.constant 0 : index
    %c0_53 = arith.constant 0 : index
    %59 = vector.load %arg7[%c2_51, %c0_52, %c0_53] : memref<9x16x64xbf16, #tpu.memory_space<vmem>>, vector<1x16x64xbf16>
    %60 = vector.shape_cast %59 : vector<1x16x64xbf16> to vector<16x64xbf16>
    %cst_54 = arith.constant dense<0.000000e+00> : vector<16x32xf32>
    %61 = tpu.matmul %60, %52, %cst_54 {dimension_numbers = #tpu.dot_dimension_numbers<[1], [0], [0], [1], [0, 0, 1, 1], [], []>} : vector<16x64xbf16>, vector<64x32xbf16>, vector<16x32xf32> -> vector<16x32xf32>
    %c3_55 = arith.constant 3 : index
    %c0_56 = arith.constant 0 : index
    %c0_57 = arith.constant 0 : index
    %62 = vector.load %arg7[%c3_55, %c0_56, %c0_57] : memref<9x16x64xbf16, #tpu.memory_space<vmem>>, vector<1x16x64xbf16>
    %63 = vector.shape_cast %62 : vector<1x16x64xbf16> to vector<16x64xbf16>
    %cst_58 = arith.constant dense<0.000000e+00> : vector<16x32xf32>
    %64 = tpu.matmul %63, %52, %cst_58 {dimension_numbers = #tpu.dot_dimension_numbers<[1], [0], [0], [1], [0, 0, 1, 1], [], []>} : vector<16x64xbf16>, vector<64x32xbf16>, vector<16x32xf32> -> vector<16x32xf32>
    %c4_59 = arith.constant 4 : index
    %c0_60 = arith.constant 0 : index
    %c0_61 = arith.constant 0 : index
    %65 = vector.load %arg7[%c4_59, %c0_60, %c0_61] : memref<9x16x64xbf16, #tpu.memory_space<vmem>>, vector<1x16x64xbf16>
    %66 = vector.shape_cast %65 : vector<1x16x64xbf16> to vector<16x64xbf16>
    %cst_62 = arith.constant dense<0.000000e+00> : vector<16x32xf32>
    %67 = tpu.matmul %66, %52, %cst_62 {dimension_numbers = #tpu.dot_dimension_numbers<[1], [0], [0], [1], [0, 0, 1, 1], [], []>} : vector<16x64xbf16>, vector<64x32xbf16>, vector<16x32xf32> -> vector<16x32xf32>
    %c5_63 = arith.constant 5 : index
    %c0_64 = arith.constant 0 : index
    %c0_65 = arith.constant 0 : index
    %68 = vector.load %arg7[%c5_63, %c0_64, %c0_65] : memref<9x16x64xbf16, #tpu.memory_space<vmem>>, vector<1x16x64xbf16>
    %69 = vector.shape_cast %68 : vector<1x16x64xbf16> to vector<16x64xbf16>
    %cst_66 = arith.constant dense<0.000000e+00> : vector<16x32xf32>
    %70 = tpu.matmul %69, %52, %cst_66 {dimension_numbers = #tpu.dot_dimension_numbers<[1], [0], [0], [1], [0, 0, 1, 1], [], []>} : vector<16x64xbf16>, vector<64x32xbf16>, vector<16x32xf32> -> vector<16x32xf32>
    %c6_67 = arith.constant 6 : index
    %c0_68 = arith.constant 0 : index
    %c0_69 = arith.constant 0 : index
    %71 = vector.load %arg7[%c6_67, %c0_68, %c0_69] : memref<9x16x64xbf16, #tpu.memory_space<vmem>>, vector<1x16x64xbf16>
    %72 = vector.shape_cast %71 : vector<1x16x64xbf16> to vector<16x64xbf16>
    %cst_70 = arith.constant dense<0.000000e+00> : vector<16x32xf32>
    %73 = tpu.matmul %72, %52, %cst_70 {dimension_numbers = #tpu.dot_dimension_numbers<[1], [0], [0], [1], [0, 0, 1, 1], [], []>} : vector<16x64xbf16>, vector<64x32xbf16>, vector<16x32xf32> -> vector<16x32xf32>
    %c7_71 = arith.constant 7 : index
    %c0_72 = arith.constant 0 : index
    %c0_73 = arith.constant 0 : index
    %74 = vector.load %arg7[%c7_71, %c0_72, %c0_73] : memref<9x16x64xbf16, #tpu.memory_space<vmem>>, vector<1x16x64xbf16>
    %75 = vector.shape_cast %74 : vector<1x16x64xbf16> to vector<16x64xbf16>
    %cst_74 = arith.constant dense<0.000000e+00> : vector<16x32xf32>
    %76 = tpu.matmul %75, %52, %cst_74 {dimension_numbers = #tpu.dot_dimension_numbers<[1], [0], [0], [1], [0, 0, 1, 1], [], []>} : vector<16x64xbf16>, vector<64x32xbf16>, vector<16x32xf32> -> vector<16x32xf32>
    %c8_75 = arith.constant 8 : index
    %c0_76 = arith.constant 0 : index
    %c0_77 = arith.constant 0 : index
    %77 = vector.load %arg7[%c8_75, %c0_76, %c0_77] : memref<9x16x64xbf16, #tpu.memory_space<vmem>>, vector<1x16x64xbf16>
    %78 = vector.shape_cast %77 : vector<1x16x64xbf16> to vector<16x64xbf16>
    %cst_78 = arith.constant dense<0.000000e+00> : vector<16x32xf32>
    %79 = tpu.matmul %78, %52, %cst_78 {dimension_numbers = #tpu.dot_dimension_numbers<[1], [0], [0], [1], [0, 0, 1, 1], [], []>} : vector<16x64xbf16>, vector<64x32xbf16>, vector<16x32xf32> -> vector<16x32xf32>
    %80 = tpu.concatenate %55, %58, %61, %64, %67, %70, %73, %76, %79 in 1 : vector<16x32xf32>, vector<16x32xf32>, vector<16x32xf32>, vector<16x32xf32>, vector<16x32xf32>, vector<16x32xf32>, vector<16x32xf32>, vector<16x32xf32>, vector<16x32xf32> -> vector<16x288xf32>
    %81 = arith.truncf %80 : vector<16x288xf32> to vector<16x288xbf16>
    %c0_79 = arith.constant 0 : index
    %c0_80 = arith.constant 0 : index
    %82 = vector.load %arg8[%c0_79, %c0_80] : memref<288x64xbf16, #tpu.memory_space<vmem>>, vector<288x64xbf16>
    %cst_81 = arith.constant dense<0.000000e+00> : vector<16x64xf32>
    %83 = tpu.matmul %81, %82, %cst_81 {dimension_numbers = #tpu.dot_dimension_numbers<[1], [0], [0], [1], [0, 0, 1, 1], [], []>} : vector<16x288xbf16>, vector<288x64xbf16>, vector<16x64xf32> -> vector<16x64xf32>
    %c0_82 = arith.constant 0 : index
    %c0_83 = arith.constant 0 : index
    %84 = vector.load %arg9[%c0_82, %c0_83] : memref<1x64xf32, #tpu.memory_space<vmem>>, vector<1x64xf32>
    %85 = vector.broadcast %84 : vector<1x64xf32> to vector<16x64xf32>
    %86 = arith.addf %83, %85 : vector<16x64xf32>
    %cst_84 = arith.constant 0.000000e+00 : f32
    %87 = vector.broadcast %cst_84 : f32 to vector<16x64xf32>
    %88 = arith.cmpf ogt, %86, %87 : vector<16x64xf32>
    %cst_85 = arith.constant 0.00999999977 : f32
    %89 = vector.broadcast %cst_85 : f32 to vector<16x64xf32>
    %90 = arith.mulf %89, %86 : vector<16x64xf32>
    %91 = arith.select %88, %86, %90 : vector<16x64xi1>, vector<16x64xf32>
    %c0_86 = arith.constant 0 : index
    %c0_87 = arith.constant 0 : index
    %92 = vector.load %arg10[%c0_86, %c0_87] : memref<16x64xf32, #tpu.memory_space<vmem>>, vector<16x64xf32>
    %93 = arith.mulf %91, %92 : vector<16x64xf32>
    %94 = vector.shape_cast %93 : vector<16x64xf32> to vector<1x16x64xf32>
    %cst_88 = arith.constant dense<0.000000e+00> : vector<1xf32>
    %95 = vector.multi_reduction <add>, %94, %cst_88 [1, 2] : vector<1x16x64xf32> to vector<1xf32>
    %96 = vector.shape_cast %95 : vector<1xf32> to vector<1x1x1xf32>
    %97 = vector.extract %96[0, 0, 0] : f32 from vector<1x1x1xf32>
    %c0_89 = arith.constant 0 : index
    %c0_90 = arith.constant 0 : index
    %98 = vector.load %arg11[%c0_89, %c0_90] : memref<1x1xf32, #tpu.memory_space<vmem>>, vector<1x1xf32>
    %99 = vector.broadcast %97 : f32 to vector<1x1xf32>
    %100 = arith.addf %99, %98 : vector<1x1xf32>
    %101 = vector.shape_cast %100 : vector<1x1xf32> to vector<1x1x1xf32>
    %102 = vector.shape_cast %101 : vector<1x1x1xf32> to vector<1x1x1xf32>
    %103 = vector.broadcast %102 : vector<1x1x1xf32> to vector<1x1x128xf32>
    %c0_91 = arith.constant 0 : index
    %c0_92 = arith.constant 0 : index
    %c0_93 = arith.constant 0 : index
    %104 = vector.load %arg12[%c0_91, %c0_92, %c0_93] : memref<1x1x128xf32, #tpu.memory_space<vmem>>, vector<1x1x128xf32>
    tpu.vector_store %arg12[%c0_91, %c0_92, %c0_93], %103 {strides = array<i32>} : memref<1x1x128xf32, #tpu.memory_space<vmem>>, vector<1x1x128xf32>,
    return
  }
  func.func @transform_0(%arg0: i32) -> (i32, i32, i32) {
    %c0_i32 = arith.constant 0 : i32
    %c0_i32_0 = arith.constant 0 : i32
    %c0_i32_1 = arith.constant 0 : i32
    return %arg0, %c0_i32, %c0_i32_0 : i32, i32, i32
  }
  func.func @transform_1(%arg0: i32) -> (i32, i32) {
    %c0_i32 = arith.constant 0 : i32
    %c0_i32_0 = arith.constant 0 : i32
    %c0_i32_1 = arith.constant 0 : i32
    return %c0_i32, %c0_i32_0 : i32, i32
  }
  func.func @transform_2(%arg0: i32) -> (i32, i32) {
    %c0_i32 = arith.constant 0 : i32
    %c0_i32_0 = arith.constant 0 : i32
    %c0_i32_1 = arith.constant 0 : i32
    return %c0_i32, %c0_i32_0 : i32, i32
  }
  func.func @transform_3(%arg0: i32) -> (i32, i32, i32) {
    %c0_i32 = arith.constant 0 : i32
    %c0_i32_0 = arith.constant 0 : i32
    %c0_i32_1 = arith.constant 0 : i32
    %c0_i32_2 = arith.constant 0 : i32
    return %c0_i32, %c0_i32_0, %c0_i32_1 : i32, i32, i32
  }
  func.func @transform_4(%arg0: i32) -> (i32, i32) {
    %c0_i32 = arith.constant 0 : i32
    %c0_i32_0 = arith.constant 0 : i32
    %c0_i32_1 = arith.constant 0 : i32
    return %c0_i32, %c0_i32_0 : i32, i32
  }
  func.func @transform_5(%arg0: i32) -> (i32, i32) {
    %c0_i32 = arith.constant 0 : i32
    %c0_i32_0 = arith.constant 0 : i32
    %c0_i32_1 = arith.constant 0 : i32
    return %c0_i32, %c0_i32_0 : i32, i32
  }
  func.func @transform_6(%arg0: i32) -> (i32, i32, i32) {
    %c0_i32 = arith.constant 0 : i32
    %c0_i32_0 = arith.constant 0 : i32
    %c0_i32_1 = arith.constant 0 : i32
    %c0_i32_2 = arith.constant 0 : i32
    return %c0_i32, %c0_i32_0, %c0_i32_1 : i32, i32, i32
  }
  func.func @transform_7(%arg0: i32) -> (i32, i32) {
    %c0_i32 = arith.constant 0 : i32
    %c0_i32_0 = arith.constant 0 : i32
    %c0_i32_1 = arith.constant 0 : i32
    return %c0_i32, %c0_i32_0 : i32, i32
  }
  func.func @transform_8(%arg0: i32) -> (i32, i32) {
    %c0_i32 = arith.constant 0 : i32
    %c0_i32_0 = arith.constant 0 : i32
    %c0_i32_1 = arith.constant 0 : i32
    return %c0_i32, %c0_i32_0 : i32, i32
  }
  func.func @transform_9(%arg0: i32) -> (i32, i32) {
    %c0_i32 = arith.constant 0 : i32
    %c0_i32_0 = arith.constant 0 : i32
    %c0_i32_1 = arith.constant 0 : i32
    return %c0_i32, %c0_i32_0 : i32, i32
  }
  func.func @transform_10(%arg0: i32) -> (i32, i32) {
    %c0_i32 = arith.constant 0 : i32
    %c0_i32_0 = arith.constant 0 : i32
    %c0_i32_1 = arith.constant 0 : i32
    return %c0_i32, %c0_i32_0 : i32, i32
  }
  func.func @transform_11(%arg0: i32) -> (i32, i32, i32) {
    %c0_i32 = arith.constant 0 : i32
    %c0_i32_0 = arith.constant 0 : i32
    %c0_i32_1 = arith.constant 0 : i32
    return %arg0, %c0_i32, %c0_i32_0 : i32, i32, i32
  }
}

</mosaic_0001>

<llo_original>
// kernel: discriminator1_forward.1
$region0: #{discriminator1_forward.1}
  #allocation0 [shape = 'u32[]', space=smem, size = 0x4, offset = 0x4, fixed_abs, tag = 'smem constant byte address 0x4 - core index']
  #allocation1 [shape = 'u32[72,128]{1,0:T(1,128)}', space=vmem, size = 0x9000, scoped, tag = 'internal scratch']
  #allocation2 [shape = 'f32[1,1]{1,0:T(1,128)S(1)}', space=vmem, size = 0x200, scoped, tag = 'scoped memory for discriminator1_forward.1']
  %s0 = inlined_call_operand.vmem [shape: bf16[2,176,32], index: 0, kind: input, shape index: {}]
  %s1 = inlined_call_operand.vmem [shape: bf16[32,16], index: 1, kind: input, shape index: {}]
  %s2 = inlined_call_operand.vmem [shape: f32[1,16], index: 2, kind: input, shape index: {}]
  %s3 = inlined_call_operand.vmem [shape: bf16[9,64,176], index: 3, kind: input, shape index: {}]
  %s4 = inlined_call_operand.vmem [shape: bf16[144,32], index: 4, kind: input, shape index: {}]
  %s5 = inlined_call_operand.vmem [shape: f32[1,32], index: 5, kind: input, shape index: {}]
  %s6 = inlined_call_operand.vmem [shape: bf16[9,16,64], index: 6, kind: input, shape index: {}]
  %s7 = inlined_call_operand.vmem [shape: bf16[288,64], index: 7, kind: input, shape index: {}]
  %s8 = inlined_call_operand.vmem [shape: f32[1,64], index: 8, kind: input, shape index: {}]
  %s9 = inlined_call_operand.vmem [shape: f32[16,64], index: 9, kind: input, shape index: {}]
  %s10 = inlined_call_operand.<no memory space> [shape: f32[1,1], index: 10, kind: input, shape index: {}]
  %s11 = inlined_call_operand.vmem [shape: f32[2,1,128], index: 11, kind: output, shape index: {}]
  %s12 = sld [smem:[#allocation0]]
  $region77: #{discriminator1_forward.1} parent=0
    _
  %s14 = ssub.s32 1, %s12
  %s15 = scalar_select 0, %s14, %s12
  %v16 = vstv %s10
  %17 = vst [vmem:[#allocation2] sm:$0x1] %v16
  loop: start=0, step=1, limit=4
  $region2: #{discriminator1_forward.1} parent=0 // loop_pre_header
    _
  $region3: #{discriminator1_forward.1} parent=0 // loop_header
    %s19 = sphi 0, %s23
    %p20 = scmp.ge.s32.totalorder %s19, 4
    %s29 = sphi 0, %s31
    %s32 = sphi 0, %s29
    %s33 = sphi 0, %s32
    %s49 = sphi 0, %s33
    %s53 = sphi 0, %s53
    %s55 = sphi 0, %s53
    %s56 = sphi 0, %s55
    %s70 = sphi 0, %s56
    %s74 = sphi 0, %s74
    %s76 = sphi 0, %s74
    %s77 = sphi 0, %s76
    %s91 = sphi 0, %s77
    %s95 = sphi 0, %s95
    %s97 = sphi 0, %s95
    %s98 = sphi 0, %s97
    %s112 = sphi 0, %s98
    %s116 = sphi 0, %s116
    %s118 = sphi 0, %s116
    %s119 = sphi 0, %s118
    %s133 = sphi 0, %s119
    %s137 = sphi 0, %s137
    %s139 = sphi 0, %s137
    %s140 = sphi 0, %s139
    %s154 = sphi 0, %s140
    %s158 = sphi 0, %s158
    %s160 = sphi 0, %s158
    %s161 = sphi 0, %s160
    %s175 = sphi 0, %s161
    %s179 = sphi 0, %s179
    %s181 = sphi 0, %s179
    %s182 = sphi 0, %s181
    %s196 = sphi 0, %s182
    %s200 = sphi 0, %s200
    %s202 = sphi 0, %s200
    %s203 = sphi 0, %s202
    %s217 = sphi 0, %s203
    %s221 = sphi 0, %s221
    %s223 = sphi 0, %s221
    %s224 = sphi 0, %s223
    %s238 = sphi 0, %s224
    %s242 = sphi 0, %s242
    %s244 = sphi 0, %s242
    %s245 = sphi 0, %s244
    %s259 = sphi 0, %s245
    %s265 = sphi 0, %s267
    %s268 = sphi 0, %s265
    %s269 = sphi 0, %s268
    %s285 = sphi 0, %s269
  $region4: #{discriminator1_forward.1} parent=0 // loop_header_branch
    %22 = sbr.rel (%p20) target = $region8
  $region5: #{discriminator1_forward.1} parent=0 // loop_body
    %s24 = ssub.s32 %s19, 1
    %s25 = ssub.s32 %s19, 2
    %s26 = sadd.s32 %s19, 1
    %s27 = ssub.s32 %s19, %s26
    %p28 = scmp.eq.s32.totalorder %s27, 0
    %s30 = sadd.s32 %s29, 1
    %s31 = scalar_select %p28, %s29, %s30
    %p34 = pneg %p28
    %p35 = scmp.eq.s32.totalorder %s19, 1
    %p36 = por %p34, %p35
    %p37 = scmp.ne.s32.totalorder %s29, %s32
    %p38 = scmp.eq.s32.totalorder %s19, 0
    %p39 = por %p37, %p38
    %p40 = scmp.ne.s32.totalorder %s29, %s32
    %p41 = scmp.eq.s32.totalorder %s24, 1
    %p42 = por %p40, %p41
    %p43 = scmp.ne.s32.totalorder %s32, %s33
    %p44 = scmp.eq.s32.totalorder %s24, 0
    %p45 = por %p43, %p44
    %p46 = scmp.ne.s32.totalorder %s32, %s33
    %p47 = scmp.eq.s32.totalorder %s25, 1
    %p48 = por %p46, %p47
    %p50 = scmp.ne.s32.totalorder %s33, %s49
    %p51 = scmp.eq.s32.totalorder %s25, 0
    %p52 = por %p50, %p51
    %s54 = sadd.s32 %s53, 1
    %p57 = scmp.eq.s32.totalorder %s19, 1
    %p58 = scmp.ne.s32.totalorder %s53, %s55
    %p59 = scmp.eq.s32.totalorder %s19, 0
    %p60 = por %p58, %p59
    %p61 = scmp.ne.s32.totalorder %s53, %s55
    %p62 = scmp.eq.s32.totalorder %s24, 1
    %p63 = por %p61, %p62
    %p64 = scmp.ne.s32.totalorder %s55, %s56
    %p65 = scmp.eq.s32.totalorder %s24, 0
    %p66 = por %p64, %p65
    %p67 = scmp.ne.s32.totalorder %s55, %s56
    %p68 = scmp.eq.s32.totalorder %s25, 1
    %p69 = por %p67, %p68
    %p71 = scmp.ne.s32.totalorder %s56, %s70
    %p72 = scmp.eq.s32.totalorder %s25, 0
    %p73 = por %p71, %p72
    %s75 = sadd.s32 %s74, 1
    %p78 = scmp.eq.s32.totalorder %s19, 1
    %p79 = scmp.ne.s32.totalorder %s74, %s76
    %p80 = scmp.eq.s32.totalorder %s19, 0
    %p81 = por %p79, %p80
    %p82 = scmp.ne.s32.totalorder %s74, %s76
    %p83 = scmp.eq.s32.totalorder %s24, 1
    %p84 = por %p82, %p83
    %p85 = scmp.ne.s32.totalorder %s76, %s77
    %p86 = scmp.eq.s32.totalorder %s24, 0
    %p87 = por %p85, %p86
    %p88 = scmp.ne.s32.totalorder %s76, %s77
    %p89 = scmp.eq.s32.totalorder %s25, 1
    %p90 = por %p88, %p89
    %p92 = scmp.ne.s32.totalorder %s77, %s91
    %p93 = scmp.eq.s32.totalorder %s25, 0
    %p94 = por %p92, %p93
    %s96 = sadd.s32 %s95, 1
    %p99 = scmp.eq.s32.totalorder %s19, 1
    %p100 = scmp.ne.s32.totalorder %s95, %s97
    %p101 = scmp.eq.s32.totalorder %s19, 0
    %p102 = por %p100, %p101
    %p103 = scmp.ne.s32.totalorder %s95, %s97
    %p104 = scmp.eq.s32.totalorder %s24, 1
    %p105 = por %p103, %p104
    %p106 = scmp.ne.s32.totalorder %s97, %s98
    %p107 = scmp.eq.s32.totalorder %s24, 0
    %p108 = por %p106, %p107
    %p109 = scmp.ne.s32.totalorder %s97, %s98
    %p110 = scmp.eq.s32.totalorder %s25, 1
    %p111 = por %p109, %p110
    %p113 = scmp.ne.s32.totalorder %s98, %s112
    %p114 = scmp.eq.s32.totalorder %s25, 0
    %p115 = por %p113, %p114
    %s117 = sadd.s32 %s116, 1
    %p120 = scmp.eq.s32.totalorder %s19, 1
    %p121 = scmp.ne.s32.totalorder %s116, %s118
    %p122 = scmp.eq.s32.totalorder %s19, 0
    %p123 = por %p121, %p122
    %p124 = scmp.ne.s32.totalorder %s116, %s118
    %p125 = scmp.eq.s32.totalorder %s24, 1
    %p126 = por %p124, %p125
    %p127 = scmp.ne.s32.totalorder %s118, %s119
    %p128 = scmp.eq.s32.totalorder %s24, 0
    %p129 = por %p127, %p128
    %p130 = scmp.ne.s32.totalorder %s118, %s119
    %p131 = scmp.eq.s32.totalorder %s25, 1
    %p132 = por %p130, %p131
    %p134 = scmp.ne.s32.totalorder %s119, %s133
    %p135 = scmp.eq.s32.totalorder %s25, 0
    %p136 = por %p134, %p135
    %s138 = sadd.s32 %s137, 1
    %p141 = scmp.eq.s32.totalorder %s19, 1
    %p142 = scmp.ne.s32.totalorder %s137, %s139
    %p143 = scmp.eq.s32.totalorder %s19, 0
    %p144 = por %p142, %p143
    %p145 = scmp.ne.s32.totalorder %s137, %s139
    %p146 = scmp.eq.s32.totalorder %s24, 1
    %p147 = por %p145, %p146
    %p148 = scmp.ne.s32.totalorder %s139, %s140
    %p149 = scmp.eq.s32.totalorder %s24, 0
    %p150 = por %p148, %p149
    %p151 = scmp.ne.s32.totalorder %s139, %s140
    %p152 = scmp.eq.s32.totalorder %s25, 1
    %p153 = por %p151, %p152
    %p155 = scmp.ne.s32.totalorder %s140, %s154
    %p156 = scmp.eq.s32.totalorder %s25, 0
    %p157 = por %p155, %p156
    %s159 = sadd.s32 %s158, 1
    %p162 = scmp.eq.s32.totalorder %s19, 1
    %p163 = scmp.ne.s32.totalorder %s158, %s160
    %p164 = scmp.eq.s32.totalorder %s19, 0
    %p165 = por %p163, %p164
    %p166 = scmp.ne.s32.totalorder %s158, %s160
    %p167 = scmp.eq.s32.totalorder %s24, 1
    %p168 = por %p166, %p167
    %p169 = scmp.ne.s32.totalorder %s160, %s161
    %p170 = scmp.eq.s32.totalorder %s24, 0
    %p171 = por %p169, %p170
    %p172 = scmp.ne.s32.totalorder %s160, %s161
    %p173 = scmp.eq.s32.totalorder %s25, 1
    %p174 = por %p172, %p173
    %p176 = scmp.ne.s32.totalorder %s161, %s175
    %p177 = scmp.eq.s32.totalorder %s25, 0
    %p178 = por %p176, %p177
    %s180 = sadd.s32 %s179, 1
    %p183 = scmp.eq.s32.totalorder %s19, 1
    %p184 = scmp.ne.s32.totalorder %s179, %s181
    %p185 = scmp.eq.s32.totalorder %s19, 0
    %p186 = por %p184, %p185
    %p187 = scmp.ne.s32.totalorder %s179, %s181
    %p188 = scmp.eq.s32.totalorder %s24, 1
    %p189 = por %p187, %p188
    %p190 = scmp.ne.s32.totalorder %s181, %s182
    %p191 = scmp.eq.s32.totalorder %s24, 0
    %p192 = por %p190, %p191
    %p193 = scmp.ne.s32.totalorder %s181, %s182
    %p194 = scmp.eq.s32.totalorder %s25, 1
    %p195 = por %p193, %p194
    %p197 = scmp.ne.s32.totalorder %s182, %s196
    %p198 = scmp.eq.s32.totalorder %s25, 0
    %p199 = por %p197, %p198
    %s201 = sadd.s32 %s200, 1
    %p204 = scmp.eq.s32.totalorder %s19, 1
    %p205 = scmp.ne.s32.totalorder %s200, %s202
    %p206 = scmp.eq.s32.totalorder %s19, 0
    %p207 = por %p205, %p206
    %p208 = scmp.ne.s32.totalorder %s200, %s202
    %p209 = scmp.eq.s32.totalorder %s24, 1
    %p210 = por %p208, %p209
    %p211 = scmp.ne.s32.totalorder %s202, %s203
    %p212 = scmp.eq.s32.totalorder %s24, 0
    %p213 = por %p211, %p212
    %p214 = scmp.ne.s32.totalorder %s202, %s203
    %p215 = scmp.eq.s32.totalorder %s25, 1
    %p216 = por %p214, %p215
    %p218 = scmp.ne.s32.totalorder %s203, %s217
    %p219 = scmp.eq.s32.totalorder %s25, 0
    %p220 = por %p218, %p219
    %s222 = sadd.s32 %s221, 1
    %p225 = scmp.eq.s32.totalorder %s19, 1
    %p226 = scmp.ne.s32.totalorder %s221, %s223
    %p227 = scmp.eq.s32.totalorder %s19, 0
    %p228 = por %p226, %p227
    %p229 = scmp.ne.s32.totalorder %s221, %s223
    %p230 = scmp.eq.s32.totalorder %s24, 1
    %p231 = por %p229, %p230
    %p232 = scmp.ne.s32.totalorder %s223, %s224
    %p233 = scmp.eq.s32.totalorder %s24, 0
    %p234 = por %p232, %p233
    %p235 = scmp.ne.s32.totalorder %s223, %s224
    %p236 = scmp.eq.s32.totalorder %s25, 1
    %p237 = por %p235, %p236
    %p239 = scmp.ne.s32.totalorder %s224, %s238
    %p240 = scmp.eq.s32.totalorder %s25, 0
    %p241 = por %p239, %p240
    %s243 = sadd.s32 %s242, 1
    %p246 = scmp.eq.s32.totalorder %s19, 1
    %p247 = scmp.ne.s32.totalorder %s242, %s244
    %p248 = scmp.eq.s32.totalorder %s19, 0
    %p249 = por %p247, %p248
    %p250 = scmp.ne.s32.totalorder %s242, %s244
    %p251 = scmp.eq.s32.totalorder %s24, 1
    %p252 = por %p250, %p251
    %p253 = scmp.ne.s32.totalorder %s244, %s245
    %p254 = scmp.eq.s32.totalorder %s24, 0
    %p255 = por %p253, %p254
    %p256 = scmp.ne.s32.totalorder %s244, %s245
    %p257 = scmp.eq.s32.totalorder %s25, 1
    %p258 = por %p256, %p257
    %p260 = scmp.ne.s32.totalorder %s245, %s259
    %p261 = scmp.eq.s32.totalorder %s25, 0
    %p262 = por %p260, %p261
    %s263 = ssub.s32 %s19, %s26
    %p264 = scmp.eq.s32.totalorder %s263, 0
    %s266 = sadd.s32 %s265, 1
    %s267 = scalar_select %p264, %s265, %s266
    %p270 = pneg %p264
    %p271 = scmp.eq.s32.totalorder %s19, 1
    %p272 = por %p270, %p271
    %p273 = scmp.ne.s32.totalorder %s265, %s268
    %p274 = scmp.eq.s32.totalorder %s19, 0
    %p275 = por %p273, %p274
    %p276 = scmp.ne.s32.totalorder %s265, %s268
    %p277 = scmp.eq.s32.totalorder %s24, 1
    %p278 = por %p276, %p277
    %p279 = scmp.ne.s32.totalorder %s268, %s269
    %p280 = scmp.eq.s32.totalorder %s24, 0
    %p281 = por %p279, %p280
    %p282 = scmp.ne.s32.totalorder %s268, %s269
    %p283 = scmp.eq.s32.totalorder %s25, 1
    %p284 = por %p282, %p283
    %p286 = scmp.ne.s32.totalorder %s269, %s285
    %p287 = scmp.eq.s32.totalorder %s25, 0
    %p288 = por %p286, %p287
    %p289 = scmp.le.s32.totalorder 1, %s19
    %p290 = scmp.lt.s32.totalorder %s19, 3
    %p291 = pnand %p289, %p290
    %p292 = pneg %p291
    // Predicated region
    $region9: #{discriminator1_forward.1} parent=5 // pred_check
      _
    $region10: #{discriminator1_forward.1} parent=5 // pred_check_branch
      %294 = sbr.rel (%p291) target = $region12
    $region11: #{discriminator1_forward.1} parent=5 // pred_region
      %s295 = ssub.s32 %s19, 1
      // Predicated region
      $region13: #{discriminator1_forward.1} parent=11 // pred_check
        %p296 = pneg %p66
      $region14: #{discriminator1_forward.1} parent=11 // pred_check_branch
        %298 = sbr.rel (%p296) target = $region16
      $region15: #{discriminator1_forward.1} parent=11 // pred_region
        _
      $region16: #{discriminator1_forward.1} parent=11 // pred_fallthru
        _
      // Predicated region
      $region17: #{discriminator1_forward.1} parent=11 // pred_check
        %p299 = pneg %p87
      $region18: #{discriminator1_forward.1} parent=11 // pred_check_branch
        %301 = sbr.rel (%p299) target = $region20
      $region19: #{discriminator1_forward.1} parent=11 // pred_region
        _
      $region20: #{discriminator1_forward.1} parent=11 // pred_fallthru
        _
      // Predicated region
      $region21: #{discriminator1_forward.1} parent=11 // pred_check
        %p302 = pneg %p108
      $region22: #{discriminator1_forward.1} parent=11 // pred_check_branch
        %304 = sbr.rel (%p302) target = $region24
      $region23: #{discriminator1_forward.1} parent=11 // pred_region
        _
      $region24: #{discriminator1_forward.1} parent=11 // pred_fallthru
        _
      // Predicated region
      $region25: #{discriminator1_forward.1} parent=11 // pred_check
        %p305 = pneg %p129
      $region26: #{discriminator1_forward.1} parent=11 // pred_check_branch
        %307 = sbr.rel (%p305) target = $region28
      $region27: #{discriminator1_forward.1} parent=11 // pred_region
        _
      $region28: #{discriminator1_forward.1} parent=11 // pred_fallthru
        _
      // Predicated region
      $region29: #{discriminator1_forward.1} parent=11 // pred_check
        %p308 = pneg %p150
      $region30: #{discriminator1_forward.1} parent=11 // pred_check_branch
        %310 = sbr.rel (%p308) target = $region32
      $region31: #{discriminator1_forward.1} parent=11 // pred_region
        _
      $region32: #{discriminator1_forward.1} parent=11 // pred_fallthru
        _
      // Predicated region
      $region33: #{discriminator1_forward.1} parent=11 // pred_check
        %p311 = pneg %p171
      $region34: #{discriminator1_forward.1} parent=11 // pred_check_branch
        %313 = sbr.rel (%p311) target = $region36
      $region35: #{discriminator1_forward.1} parent=11 // pred_region
        _
      $region36: #{discriminator1_forward.1} parent=11 // pred_fallthru
        _
      // Predicated region
      $region37: #{discriminator1_forward.1} parent=11 // pred_check
        %p314 = pneg %p192
      $region38: #{discriminator1_forward.1} parent=11 // pred_check_branch
        %316 = sbr.rel (%p314) target = $region40
      $region39: #{discriminator1_forward.1} parent=11 // pred_region
        _
      $region40: #{discriminator1_forward.1} parent=11 // pred_fallthru
        _
      // Predicated region
      $region41: #{discriminator1_forward.1} parent=11 // pred_check
        %p317 = pneg %p213
      $region42: #{discriminator1_forward.1} parent=11 // pred_check_branch
        %319 = sbr.rel (%p317) target = $region44
      $region43: #{discriminator1_forward.1} parent=11 // pred_region
        _
      $region44: #{discriminator1_forward.1} parent=11 // pred_fallthru
        _
      // Predicated region
      $region45: #{discriminator1_forward.1} parent=11 // pred_check
        %p320 = pneg %p234
      $region46: #{discriminator1_forward.1} parent=11 // pred_check_branch
        %322 = sbr.rel (%p320) target = $region48
      $region47: #{discriminator1_forward.1} parent=11 // pred_region
        _
      $region48: #{discriminator1_forward.1} parent=11 // pred_fallthru
        _
      // Predicated region
      $region49: #{discriminator1_forward.1} parent=11 // pred_check
        %p323 = pneg %p255
      $region50: #{discriminator1_forward.1} parent=11 // pred_check_branch
        %325 = sbr.rel (%p323) target = $region52
      $region51: #{discriminator1_forward.1} parent=11 // pred_region
        _
      $region52: #{discriminator1_forward.1} parent=11 // pred_fallthru
        _
    $region12: #{discriminator1_forward.1} parent=5 // pred_fallthru
      _
    %p326 = scmp.lt.s32.totalorder %s19, 2
    // Predicated region
    $region53: #{discriminator1_forward.1} parent=5 // pred_check
      %p327 = pneg %p326
    $region54: #{discriminator1_forward.1} parent=5 // pred_check_branch
      %329 = sbr.rel (%p327) target = $region56
    $region55: #{discriminator1_forward.1} parent=5 // pred_region
      // Predicated region
      $region57: #{discriminator1_forward.1} parent=55 // pred_check
        %p330 = pneg %p39
      $region58: #{discriminator1_forward.1} parent=55 // pred_check_branch
        %332 = sbr.rel (%p330) target = $region60
      $region59: #{discriminator1_forward.1} parent=55 // pred_region
        %p333 = scmp.lt.s32.totalorder %s19, 1
        %s334 = scalar_select %p333, %s19, 1
        %s335 = smul.addr %s334, 22
        %s336 = smul.addr %s335, 4
        %s337 = scalar_lea.vmem %s0, %s336
      $region60: #{discriminator1_forward.1} parent=55 // pred_fallthru
        _
    $region56: #{discriminator1_forward.1} parent=5 // pred_fallthru
      _
    %p338 = scmp.le.s32.totalorder 1, %s19
    %p339 = scmp.lt.s32.totalorder %s19, 3
    %p340 = pnand %p338, %p339
    %p341 = pneg %p340
    // Predicated region
    $region61: #{discriminator1_forward.1} parent=5 // pred_check
      _
    $region62: #{discriminator1_forward.1} parent=5 // pred_check_branch
      %343 = sbr.rel (%p340) target = $region64
    $region63: #{discriminator1_forward.1} parent=5 // pred_region
      %s344 = ssub.s32 %s19, 1
      %p345 = scmp.lt.s32.totalorder %s24, 1
      %s346 = scalar_select %p345, %s24, 1
      %s347 = smul.addr %s346, 22
      %s348 = smul.addr %s347, 4
      %s349 = scalar_lea.vmem %s0, %s348
      %p350 = pneg %p45
      %p351 = pneg %p42
      %p352 = pneg %p66
      %p353 = pneg %p63
      %p354 = pneg %p87
      %p355 = pneg %p84
      %p356 = pneg %p108
      %p357 = pneg %p105
      %p358 = pneg %p129
      %p359 = pneg %p126
      %p360 = pneg %p150
      %p361 = pneg %p147
      %p362 = pneg %p171
      %p363 = pneg %p168
      %p364 = pneg %p192
      %p365 = pneg %p189
      %p366 = pneg %p213
      %p367 = pneg %p210
      %p368 = pneg %p234
      %p369 = pneg %p231
      %p370 = pneg %p255
      %p371 = pneg %p252
      %p372 = pneg %p281
      %p373 = pneg %p278
      %p374 = scmp.lt.s32.totalorder %s24, 1
      %s375 = scalar_select %p374, %s24, 1
      %s376 = scalar_lea.vmem %s11, %s375
      %p377 = scmp.lt.s32.totalorder %s24, 1
      %s378 = scalar_select %p377, %s24, 1
      %s379 = smul.addr %s378, 22
      %s380 = smul.addr %s379, 4
      %s381 = scalar_lea.vmem %s0, %s380
      %p382 = scmp.lt.s32.totalorder %s24, 1
      %s383 = scalar_select %p382, %s24, 1
      %s384 = scalar_lea.vmem %s11, %s383
      %v386 = vld [vmem:[%s381] sm:$0xf]
      %v387 = vld [vmem:[%s381 + $0x4] sm:$0xf]
      %v388 = vld [vmem:[%s381 + $0x8] sm:$0xf]
      %v389 = vld [vmem:[%s381 + $0xc] sm:$0xf]
      %v390 = vld [vmem:[%s381 + $0x10] sm:$0xf]
      %v391 = vld [vmem:[%s381 + $0x14] sm:$0xf]
      %v392 = vld [vmem:[%s381 + $0x18] sm:$0xf]
      %v393 = vld [vmem:[%s381 + $0x1c] sm:$0xf]
      %v394 = vld [vmem:[%s381 + $0x20] sm:$0xf]
      %v395 = vld [vmem:[%s381 + $0x24] sm:$0xf]
      %v396 = vld [vmem:[%s381 + $0x28] sm:$0xf]
      %v397 = vld [vmem:[%s381 + $0x2c] sm:$0xf]
      %v398 = vld [vmem:[%s381 + $0x30] sm:$0xf]
      %v399 = vld [vmem:[%s381 + $0x34] sm:$0xf]
      %v400 = vld [vmem:[%s381 + $0x38] sm:$0xf]
      %v401 = vld [vmem:[%s381 + $0x3c] sm:$0xf]
      %v402 = vld [vmem:[%s381 + $0x40] sm:$0xf]
      %v403 = vld [vmem:[%s381 + $0x44] sm:$0xf]
      %v404 = vld [vmem:[%s381 + $0x48] sm:$0xf]
      %v405 = vld [vmem:[%s381 + $0x4c] sm:$0xf]
      %v406 = vld [vmem:[%s381 + $0x50] sm:$0xf]
      %v407 = vld [vmem:[%s381 + $0x54] sm:$0xf]
      %v408 = vld [vmem:[%s1] sm:$0xf]
      %v409 = vld [vmem:[%s1 + $0x4] sm:$0xf]
      %v410 = vld [vmem:[%s1 + $0x8] sm:$0xf]
      %v411 = vld [vmem:[%s1 + $0xc] sm:$0xf]
      %v412 = vld [vmem:[%s2] sm:$0x1]
      %v414 = vperm.slane %v412, 0
      %v438 = vunpack.c.l.b16 %v386
      %v439 = vunpack.c.l.b16 %v387
      %v440 = vunpack.c.l.b16 %v388
      %v441 = vunpack.c.l.b16 %v389
      %v442 = vunpack.c.l.b16 %v390
      %v443 = vunpack.c.l.b16 %v391
      %v444 = vunpack.c.l.b16 %v392
      %v445 = vunpack.c.l.b16 %v393
      %v446 = vunpack.c.l.b16 %v394
      %v447 = vunpack.c.l.b16 %v395
      %v448 = vunpack.c.l.b16 %v396
      %v449 = vunpack.c.l.b16 %v397
      %v450 = vunpack.c.l.b16 %v398
      %v451 = vunpack.c.l.b16 %v399
      %v452 = vunpack.c.l.b16 %v400
      %v453 = vunpack.c.l.b16 %v401
      %v454 = vunpack.c.l.b16 %v402
      %v455 = vunpack.c.l.b16 %v403
      %v456 = vunpack.c.l.b16 %v404
      %v457 = vunpack.c.l.b16 %v405
      %v458 = vunpack.c.l.b16 %v406
      %v459 = vunpack.c.l.b16 %v407
      %v460 = vpack.c.b16 %v439, %v438
      %v461 = vpack.c.b16 %v441, %v440
      %v462 = vpack.c.b16 %v443, %v442
      %v463 = vpack.c.b16 %v445, %v444
      %v464 = vpack.c.b16 %v447, %v446
      %v465 = vpack.c.b16 %v449, %v448
      %v466 = vpack.c.b16 %v451, %v450
      %v467 = vpack.c.b16 %v453, %v452
      %v468 = vpack.c.b16 %v455, %v454
      %v469 = vpack.c.b16 %v457, %v456
      %v470 = vpack.c.b16 %v459, %v458
      %v475 = vunpack.c.l.b16 %v408
      %v476 = vunpack.c.l.b16 %v409
      %v477 = vunpack.c.l.b16 %v410
      %v478 = vunpack.c.l.b16 %v411
      %v479 = vpack.c.b16 %v476, %v475
      %v480 = vpack.c.b16 %v478, %v477
      %vm483 = vcmask 261120
      %v485 = vsel %vm483, %v460, 0
      %v488 = vsel %vm483, %v461, 0
      %v491 = vsel %vm483, %v462, 0
      %v494 = vsel %vm483, %v463, 0
      %v497 = vsel %vm483, %v464, 0
      %v500 = vsel %vm483, %v465, 0
      %v503 = vsel %vm483, %v466, 0
      %v506 = vsel %vm483, %v467, 0
      %v509 = vsel %vm483, %v468, 0
      %v512 = vsel %vm483, %v469, 0
      %v515 = vsel %vm483, %v470, 0
      %517 = vmatpush.bf16.msra.mxu0 0
      %518 = vmatpush.bf16.msra.mxu0 0
      %519 = vmatpush.bf16.msra.mxu0 0
      %520 = vmatpush.bf16.msra.mxu0 0
      %521 = vmatpush.bf16.msra.mxu0 0
      %522 = vmatpush.bf16.msra.mxu0 0
      %523 = vmatpush.bf16.msra.mxu0 %v480
      %524 = vmatpush.bf16.msra.mxu0 %v479
      %525 = vmatmul.bf16.gmra.mxu0 %v485
      %v526 = vpop.f32.mrf.mxu0
      %v527 = vadd.f32 %v414, %v526
      %v528 = vpop.f32.mrf.mxu0
      %v529 = vadd.f32 %v414, %v528
      %530 = vmatmul.bf16.gmra.mxu0 %v488
      %v531 = vpop.f32.mrf.mxu0
      %v532 = vadd.f32 %v414, %v531
      %v533 = vpop.f32.mrf.mxu0
      %v534 = vadd.f32 %v414, %v533
      %535 = vmatmul.bf16.gmra.mxu0 %v491
      %v536 = vpop.f32.mrf.mxu0
      %v537 = vadd.f32 %v414, %v536
      %v538 = vpop.f32.mrf.mxu0
      %v539 = vadd.f32 %v414, %v538
      %540 = vmatmul.bf16.gmra.mxu0 %v494
      %v541 = vpop.f32.mrf.mxu0
      %v542 = vadd.f32 %v414, %v541
      %v543 = vpop.f32.mrf.mxu0
      %v544 = vadd.f32 %v414, %v543
      %545 = vmatmul.bf16.gmra.mxu0 %v497
      %v546 = vpop.f32.mrf.mxu0
      %v547 = vadd.f32 %v414, %v546
      %v548 = vpop.f32.mrf.mxu0
      %v549 = vadd.f32 %v414, %v548
      %550 = vmatmul.bf16.gmra.mxu0 %v500
      %v551 = vpop.f32.mrf.mxu0
      %v552 = vadd.f32 %v414, %v551
      %v553 = vpop.f32.mrf.mxu0
      %v554 = vadd.f32 %v414, %v553
      %555 = vmatmul.bf16.gmra.mxu0 %v503
      %v556 = vpop.f32.mrf.mxu0
      %v557 = vadd.f32 %v414, %v556
      %v558 = vpop.f32.mrf.mxu0
      %v559 = vadd.f32 %v414, %v558
      %560 = vmatmul.bf16.gmra.mxu0 %v506
      %v561 = vpop.f32.mrf.mxu0
      %v562 = vadd.f32 %v414, %v561
      %v563 = vpop.f32.mrf.mxu0
      %v564 = vadd.f32 %v414, %v563
      %565 = vmatmul.bf16.gmra.mxu0 %v509
      %v566 = vpop.f32.mrf.mxu0
      %v567 = vadd.f32 %v414, %v566
      %v568 = vpop.f32.mrf.mxu0
      %v569 = vadd.f32 %v414, %v568
      %570 = vmatmul.bf16.gmra.mxu0 %v512
      %v571 = vpop.f32.mrf.mxu0
      %v572 = vadd.f32 %v414, %v571
      %v573 = vpop.f32.mrf.mxu0
      %v574 = vadd.f32 %v414, %v573
      %575 = vmatmul.bf16.gmra.mxu0 %v515
      %v576 = vpop.f32.mrf.mxu0
      %v577 = vadd.f32 %v414, %v576
      %v578 = vpop.f32.mrf.mxu0
      %v579 = vadd.f32 %v414, %v578
      %580 = vdwg.mxu0
      %vm581 = vcmp.gt.f32.partialorder %v527, 0.0
      %vm582 = vcmp.gt.f32.partialorder %v529, 0.0
      %vm583 = vcmp.gt.f32.partialorder %v532, 0.0
      %vm584 = vcmp.gt.f32.partialorder %v534, 0.0
      %vm585 = vcmp.gt.f32.partialorder %v537, 0.0
      %vm586 = vcmp.gt.f32.partialorder %v539, 0.0
      %vm587 = vcmp.gt.f32.partialorder %v542, 0.0
      %vm588 = vcmp.gt.f32.partialorder %v544, 0.0
      %vm589 = vcmp.gt.f32.partialorder %v547, 0.0
      %vm590 = vcmp.gt.f32.partialorder %v549, 0.0
      %vm591 = vcmp.gt.f32.partialorder %v552, 0.0
      %vm592 = vcmp.gt.f32.partialorder %v554, 0.0
      %vm593 = vcmp.gt.f32.partialorder %v557, 0.0
      %vm594 = vcmp.gt.f32.partialorder %v559, 0.0
      %vm595 = vcmp.gt.f32.partialorder %v562, 0.0
      %vm596 = vcmp.gt.f32.partialorder %v564, 0.0
      %vm597 = vcmp.gt.f32.partialorder %v567, 0.0
      %vm598 = vcmp.gt.f32.partialorder %v569, 0.0
      %vm599 = vcmp.gt.f32.partialorder %v572, 0.0
      %vm600 = vcmp.gt.f32.partialorder %v574, 0.0
      %vm601 = vcmp.gt.f32.partialorder %v577, 0.0
      %vm602 = vcmp.gt.f32.partialorder %v579, 0.0
      %v603 = vmul.f32 %v527, 0.01
      %v604 = vmul.f32 %v529, 0.01
      %v605 = vmul.f32 %v532, 0.01
      %v606 = vmul.f32 %v534, 0.01
      %v607 = vmul.f32 %v537, 0.01
      %v608 = vmul.f32 %v539, 0.01
      %v609 = vmul.f32 %v542, 0.01
      %v610 = vmul.f32 %v544, 0.01
      %v611 = vmul.f32 %v547, 0.01
      %v612 = vmul.f32 %v549, 0.01
      %v613 = vmul.f32 %v552, 0.01
      %v614 = vmul.f32 %v554, 0.01
      %v615 = vmul.f32 %v557, 0.01
      %v616 = vmul.f32 %v559, 0.01
      %v617 = vmul.f32 %v562, 0.01
      %v618 = vmul.f32 %v564, 0.01
      %v619 = vmul.f32 %v567, 0.01
      %v620 = vmul.f32 %v569, 0.01
      %v621 = vmul.f32 %v572, 0.01
      %v622 = vmul.f32 %v574, 0.01
      %v623 = vmul.f32 %v577, 0.01
      %v624 = vmul.f32 %v579, 0.01
      %v625 = vsel %vm581, %v527, %v603
      %v626 = vsel %vm582, %v529, %v604
      %v627 = vsel %vm583, %v532, %v605
      %v628 = vsel %vm584, %v534, %v606
      %v629 = vsel %vm585, %v537, %v607
      %v630 = vsel %vm586, %v539, %v608
      %v631 = vsel %vm587, %v542, %v609
      %v632 = vsel %vm588, %v544, %v610
      %v633 = vsel %vm589, %v547, %v611
      %v634 = vsel %vm590, %v549, %v612
      %v635 = vsel %vm591, %v552, %v613
      %v636 = vsel %vm592, %v554, %v614
      %v637 = vsel %vm593, %v557, %v615
      %v638 = vsel %vm594, %v559, %v616
      %v639 = vsel %vm595, %v562, %v617
      %v640 = vsel %vm596, %v564, %v618
      %v641 = vsel %vm597, %v567, %v619
      %v642 = vsel %vm598, %v569, %v620
      %v643 = vsel %vm599, %v572, %v621
      %v644 = vsel %vm600, %v574, %v622
      %v645 = vsel %vm601, %v577, %v623
      %v646 = vsel %vm602, %v579, %v624
      %v647 = vpack.c.bf16 %v626, %v625
      %v648 = vpack.c.bf16 %v628, %v627
      %v649 = vpack.c.bf16 %v630, %v629
      %v650 = vpack.c.bf16 %v632, %v631
      %v651 = vpack.c.bf16 %v634, %v633
      %v652 = vpack.c.bf16 %v636, %v635
      %v653 = vpack.c.bf16 %v638, %v637
      %v654 = vpack.c.bf16 %v640, %v639
      %v655 = vpack.c.bf16 %v642, %v641
      %v656 = vpack.c.bf16 %v644, %v643
      %v657 = vpack.c.bf16 %v646, %v645
      %v658 = vld [vmem:[%s3] sm:$0xff]
      %v659 = vld [vmem:[%s3 + $0x8] sm:$0xff]
      %v660 = vld [vmem:[%s3 + $0x10] sm:$0xff]
      %v661 = vld [vmem:[%s3 + $0x18] sm:$0xff]
      %v662 = vld [vmem:[%s3 + $0x20] sm:$0xff]
      %v663 = vld [vmem:[%s3 + $0x28] sm:$0xff]
      %v664 = vld [vmem:[%s3 + $0x30] sm:$0xff]
      %v665 = vld [vmem:[%s3 + $0x38] sm:$0xff]
      %v674 = vunpack.c.l.b16 %v658
      %v675 = vunpack.c.h.b16 %v658
      %v676 = vunpack.c.l.b16 %v659
      %v677 = vunpack.c.h.b16 %v659
      %v678 = vunpack.c.l.b16 %v660
      %v679 = vunpack.c.h.b16 %v660
      %v680 = vunpack.c.l.b16 %v661
      %v681 = vunpack.c.h.b16 %v661
      %v682 = vunpack.c.l.b16 %v662
      %v683 = vunpack.c.h.b16 %v662
      %v684 = vunpack.c.l.b16 %v663
      %v685 = vunpack.c.h.b16 %v663
      %v686 = vunpack.c.l.b16 %v664
      %v687 = vunpack.c.h.b16 %v664
      %v688 = vunpack.c.l.b16 %v665
      %v689 = vunpack.c.h.b16 %v665
      %v690 = vpack.c.b16 %v676, %v674
      %v691 = vpack.c.b16 %v677, %v675
      %v692 = vpack.c.b16 %v680, %v678
      %v693 = vpack.c.b16 %v681, %v679
      %v694 = vpack.c.b16 %v684, %v682
      %v695 = vpack.c.b16 %v685, %v683
      %v696 = vpack.c.b16 %v688, %v686
      %v697 = vpack.c.b16 %v689, %v687
      %vm702 = vcmask 392192
      %v704 = vsel %vm702, %v691, 0
      %v707 = vsel %vm702, %v693, 0
      %v710 = vsel %vm702, %v695, 0
      %v713 = vsel %vm702, %v697, 0
      %715 = vmatpush.bf16.msra.mxu0 %v654
      %716 = vmatpush.bf16.msra.mxu0 %v653
      %717 = vmatpush.bf16.msra.mxu0 %v652
      %718 = vmatpush.bf16.msra.mxu0 %v651
      %719 = vmatpush.bf16.msra.mxu0 %v650
      %720 = vmatpush.bf16.msra.mxu0 %v649
      %721 = vmatpush.bf16.msra.mxu0 %v648
      %722 = vmatpush.bf16.msra.mxu0 %v647
      %723 = vmatmul.bf16.gmra.mxu0 %v690
      %v724 = vpop.f32.mrf.mxu0
      %v725 = vadd.f32 0.0, %v724
      %v726 = vpop.f32.mrf.mxu0
      %v727 = vadd.f32 0.0, %v726
      %728 = vmatmul.bf16.gmra.mxu0 %v692
      %v729 = vpop.f32.mrf.mxu0
      %v730 = vadd.f32 0.0, %v729
      %v731 = vpop.f32.mrf.mxu0
      %v732 = vadd.f32 0.0, %v731
      %733 = vmatmul.bf16.gmra.mxu0 %v694
      %v734 = vpop.f32.mrf.mxu0
      %v735 = vadd.f32 0.0, %v734
      %v736 = vpop.f32.mrf.mxu0
      %v737 = vadd.f32 0.0, %v736
      %738 = vmatmul.bf16.gmra.mxu0 %v696
      %v739 = vpop.f32.mrf.mxu0
      %v740 = vadd.f32 0.0, %v739
      %v741 = vpop.f32.mrf.mxu0
      %v742 = vadd.f32 0.0, %v741
      %743 = vdwg.mxu0
      %744 = vmatpush.bf16.msra.mxu0 0
      %745 = vmatpush.bf16.msra.mxu0 0
      %746 = vmatpush.bf16.msra.mxu0 0
      %747 = vmatpush.bf16.msra.mxu0 0
      %748 = vmatpush.bf16.msra.mxu0 0
      %749 = vmatpush.bf16.msra.mxu0 %v657
      %750 = vmatpush.bf16.msra.mxu0 %v656
      %751 = vmatpush.bf16.msra.mxu0 %v655
      %752 = vmatmul.bf16.gmra.mxu0 %v704
      %v753 = vpop.f32.mrf.mxu0
      %v754 = vadd.f32 %v725, %v753
      %v755 = vpop.f32.mrf.mxu0
      %v756 = vadd.f32 %v727, %v755
      %757 = vmatmul.bf16.gmra.mxu0 %v707
      %v758 = vpop.f32.mrf.mxu0
      %v759 = vadd.f32 %v730, %v758
      %v760 = vpop.f32.mrf.mxu0
      %v761 = vadd.f32 %v732, %v760
      %762 = vmatmul.bf16.gmra.mxu0 %v710
      %v763 = vpop.f32.mrf.mxu0
      %v764 = vadd.f32 %v735, %v763
      %v765 = vpop.f32.mrf.mxu0
      %v766 = vadd.f32 %v737, %v765
      %767 = vmatmul.bf16.gmra.mxu0 %v713
      %v768 = vpop.f32.mrf.mxu0
      %v769 = vadd.f32 %v740, %v768
      %v770 = vpop.f32.mrf.mxu0
      %v771 = vadd.f32 %v742, %v770
      %772 = vdwg.mxu0
      %s773 = scalar_lea.vmem %s3, 64
      %v774 = vld [vmem:[%s773] sm:$0xff]
      %v775 = vld [vmem:[%s773 + $0x8] sm:$0xff]
      %v776 = vld [vmem:[%s773 + $0x10] sm:$0xff]
      %v777 = vld [vmem:[%s773 + $0x18] sm:$0xff]
      %v778 = vld [vmem:[%s773 + $0x20] sm:$0xff]
      %v779 = vld [vmem:[%s773 + $0x28] sm:$0xff]
      %v780 = vld [vmem:[%s773 + $0x30] sm:$0xff]
      %v781 = vld [vmem:[%s773 + $0x38] sm:$0xff]
      %v790 = vunpack.c.l.b16 %v774
      %v791 = vunpack.c.h.b16 %v774
      %v792 = vunpack.c.l.b16 %v775
      %v793 = vunpack.c.h.b16 %v775
      %v794 = vunpack.c.l.b16 %v776
      %v795 = vunpack.c.h.b16 %v776
      %v796 = vunpack.c.l.b16 %v777
      %v797 = vunpack.c.h.b16 %v777
      %v798 = vunpack.c.l.b16 %v778
      %v799 = vunpack.c.h.b16 %v778
      %v800 = vunpack.c.l.b16 %v779
      %v801 = vunpack.c.h.b16 %v779
      %v802 = vunpack.c.l.b16 %v780
      %v803 = vunpack.c.h.b16 %v780
      %v804 = vunpack.c.l.b16 %v781
      %v805 = vunpack.c.h.b16 %v781
      %v806 = vpack.c.b16 %v792, %v790
      %v807 = vpack.c.b16 %v793, %v791
      %v808 = vpack.c.b16 %v796, %v794
      %v809 = vpack.c.b16 %v797, %v795
      %v810 = vpack.c.b16 %v800, %v798
      %v811 = vpack.c.b16 %v801, %v799
      %v812 = vpack.c.b16 %v804, %v802
      %v813 = vpack.c.b16 %v805, %v803
      %v819 = vsel %vm702, %v807, 0
      %v822 = vsel %vm702, %v809, 0
      %v825 = vsel %vm702, %v811, 0
      %v828 = vsel %vm702, %v813, 0
      %830 = vmatpush.bf16.msra.mxu0 %v654
      %831 = vmatpush.bf16.msra.mxu0 %v653
      %832 = vmatpush.bf16.msra.mxu0 %v652
      %833 = vmatpush.bf16.msra.mxu0 %v651
      %834 = vmatpush.bf16.msra.mxu0 %v650
      %835 = vmatpush.bf16.msra.mxu0 %v649
      %836 = vmatpush.bf16.msra.mxu0 %v648
      %837 = vmatpush.bf16.msra.mxu0 %v647
      %838 = vmatmul.bf16.gmra.mxu0 %v806
      %v839 = vpop.f32.mrf.mxu0
      %v840 = vadd.f32 0.0, %v839
      %v841 = vpop.f32.mrf.mxu0
      %v842 = vadd.f32 0.0, %v841
      %843 = vmatmul.bf16.gmra.mxu0 %v808
      %v844 = vpop.f32.mrf.mxu0
      %v845 = vadd.f32 0.0, %v844
      %v846 = vpop.f32.mrf.mxu0
      %v847 = vadd.f32 0.0, %v846
      %848 = vmatmul.bf16.gmra.mxu0 %v810
      %v849 = vpop.f32.mrf.mxu0
      %v850 = vadd.f32 0.0, %v849
      %v851 = vpop.f32.mrf.mxu0
      %v852 = vadd.f32 0.0, %v851
      %853 = vmatmul.bf16.gmra.mxu0 %v812
      %v854 = vpop.f32.mrf.mxu0
      %v855 = vadd.f32 0.0, %v854
      %v856 = vpop.f32.mrf.mxu0
      %v857 = vadd.f32 0.0, %v856
      %858 = vdwg.mxu0
      %859 = vmatpush.bf16.msra.mxu0 0
      %860 = vmatpush.bf16.msra.mxu0 0
      %861 = vmatpush.bf16.msra.mxu0 0
      %862 = vmatpush.bf16.msra.mxu0 0
      %863 = vmatpush.bf16.msra.mxu0 0
      %864 = vmatpush.bf16.msra.mxu0 %v657
      %865 = vmatpush.bf16.msra.mxu0 %v656
      %866 = vmatpush.bf16.msra.mxu0 %v655
      %867 = vmatmul.bf16.gmra.mxu0 %v819
      %v868 = vpop.f32.mrf.mxu0
      %v869 = vadd.f32 %v840, %v868
      %v870 = vpop.f32.mrf.mxu0
      %v871 = vadd.f32 %v842, %v870
      %872 = vmatmul.bf16.gmra.mxu0 %v822
      %v873 = vpop.f32.mrf.mxu0
      %v874 = vadd.f32 %v845, %v873
      %v875 = vpop.f32.mrf.mxu0
      %v876 = vadd.f32 %v847, %v875
      %877 = vmatmul.bf16.gmra.mxu0 %v825
      %v878 = vpop.f32.mrf.mxu0
      %v879 = vadd.f32 %v850, %v878
      %v880 = vpop.f32.mrf.mxu0
      %v881 = vadd.f32 %v852, %v880
      %882 = vmatmul.bf16.gmra.mxu0 %v828
      %v883 = vpop.f32.mrf.mxu0
      %v884 = vadd.f32 %v855, %v883
      %v885 = vpop.f32.mrf.mxu0
      %v886 = vadd.f32 %v857, %v885
      %887 = vdwg.mxu0
      %s888 = scalar_lea.vmem %s3, 128
      %v889 = vld [vmem:[%s888] sm:$0xff]
      %v890 = vld [vmem:[%s888 + $0x8] sm:$0xff]
      %v891 = vld [vmem:[%s888 + $0x10] sm:$0xff]
      %v892 = vld [vmem:[%s888 + $0x18] sm:$0xff]
      %v893 = vld [vmem:[%s888 + $0x20] sm:$0xff]
      %v894 = vld [vmem:[%s888 + $0x28] sm:$0xff]
      %v895 = vld [vmem:[%s888 + $0x30] sm:$0xff]
      %v896 = vld [vmem:[%s888 + $0x38] sm:$0xff]
      %v905 = vunpack.c.l.b16 %v889
      %v906 = vunpack.c.h.b16 %v889
      %v907 = vunpack.c.l.b16 %v890
      %v908 = vunpack.c.h.b16 %v890
      %v909 = vunpack.c.l.b16 %v891
      %v910 = vunpack.c.h.b16 %v891
      %v911 = vunpack.c.l.b16 %v892
      %v912 = vunpack.c.h.b16 %v892
      %v913 = vunpack.c.l.b16 %v893
      %v914 = vunpack.c.h.b16 %v893
      %v915 = vunpack.c.l.b16 %v894
      %v916 = vunpack.c.h.b16 %v894
      %v917 = vunpack.c.l.b16 %v895
      %v918 = vunpack.c.h.b16 %v895
      %v919 = vunpack.c.l.b16 %v896
      %v920 = vunpack.c.h.b16 %v896
      %v921 = vpack.c.b16 %v907, %v905
      %v922 = vpack.c.b16 %v908, %v906
      %v923 = vpack.c.b16 %v911, %v909
      %v924 = vpack.c.b16 %v912, %v910
      %v925 = vpack.c.b16 %v915, %v913
      %v926 = vpack.c.b16 %v916, %v914
      %v927 = vpack.c.b16 %v919, %v917
      %v928 = vpack.c.b16 %v920, %v918
      %v934 = vsel %vm702, %v922, 0
      %v937 = vsel %vm702, %v924, 0
      %v940 = vsel %vm702, %v926, 0
      %v943 = vsel %vm702, %v928, 0
      %945 = vmatpush.bf16.msra.mxu0 %v654
      %946 = vmatpush.bf16.msra.mxu0 %v653
      %947 = vmatpush.bf16.msra.mxu0 %v652
      %948 = vmatpush.bf16.msra.mxu0 %v651
      %949 = vmatpush.bf16.msra.mxu0 %v650
      %950 = vmatpush.bf16.msra.mxu0 %v649
      %951 = vmatpush.bf16.msra.mxu0 %v648
      %952 = vmatpush.bf16.msra.mxu0 %v647
      %953 = vmatmul.bf16.gmra.mxu0 %v921
      %v954 = vpop.f32.mrf.mxu0
      %v955 = vadd.f32 0.0, %v954
      %v956 = vpop.f32.mrf.mxu0
      %v957 = vadd.f32 0.0, %v956
      %958 = vmatmul.bf16.gmra.mxu0 %v923
      %v959 = vpop.f32.mrf.mxu0
      %v960 = vadd.f32 0.0, %v959
      %v961 = vpop.f32.mrf.mxu0
      %v962 = vadd.f32 0.0, %v961
      %963 = vmatmul.bf16.gmra.mxu0 %v925
      %v964 = vpop.f32.mrf.mxu0
      %v965 = vadd.f32 0.0, %v964
      %v966 = vpop.f32.mrf.mxu0
      %v967 = vadd.f32 0.0, %v966
      %968 = vmatmul.bf16.gmra.mxu0 %v927
      %v969 = vpop.f32.mrf.mxu0
      %v970 = vadd.f32 0.0, %v969
      %v971 = vpop.f32.mrf.mxu0
      %v972 = vadd.f32 0.0, %v971
      %973 = vdwg.mxu0
      %974 = vmatpush.bf16.msra.mxu0 0
      %975 = vmatpush.bf16.msra.mxu0 0
      %976 = vmatpush.bf16.msra.mxu0 0
      %977 = vmatpush.bf16.msra.mxu0 0
      %978 = vmatpush.bf16.msra.mxu0 0
      %979 = vmatpush.bf16.msra.mxu0 %v657
      %980 = vmatpush.bf16.msra.mxu0 %v656
      %981 = vmatpush.bf16.msra.mxu0 %v655
      %982 = vmatmul.bf16.gmra.mxu0 %v934
      %v983 = vpop.f32.mrf.mxu0
      %v984 = vadd.f32 %v955, %v983
      %v985 = vpop.f32.mrf.mxu0
      %v986 = vadd.f32 %v957, %v985
      %987 = vmatmul.bf16.gmra.mxu0 %v937
      %v988 = vpop.f32.mrf.mxu0
      %v989 = vadd.f32 %v960, %v988
      %v990 = vpop.f32.mrf.mxu0
      %v991 = vadd.f32 %v962, %v990
      %992 = vmatmul.bf16.gmra.mxu0 %v940
      %v993 = vpop.f32.mrf.mxu0
      %v994 = vadd.f32 %v965, %v993
      %v995 = vpop.f32.mrf.mxu0
      %v996 = vadd.f32 %v967, %v995
      %997 = vmatmul.bf16.gmra.mxu0 %v943
      %v998 = vpop.f32.mrf.mxu0
      %v999 = vadd.f32 %v970, %v998
      %v1000 = vpop.f32.mrf.mxu0
      %v1001 = vadd.f32 %v972, %v1000
      %1002 = vdwg.mxu0
      %s1003 = scalar_lea.vmem %s3, 192
      %v1004 = vld [vmem:[%s1003] sm:$0xff]
      %v1005 = vld [vmem:[%s1003 + $0x8] sm:$0xff]
      %v1006 = vld [vmem:[%s1003 + $0x10] sm:$0xff]
      %v1007 = vld [vmem:[%s1003 + $0x18] sm:$0xff]
      %v1008 = vld [vmem:[%s1003 + $0x20] sm:$0xff]
      %v1009 = vld [vmem:[%s1003 + $0x28] sm:$0xff]
      %v1010 = vld [vmem:[%s1003 + $0x30] sm:$0xff]
      %v1011 = vld [vmem:[%s1003 + $0x38] sm:$0xff]
      %v1020 = vunpack.c.l.b16 %v1004
      %v1021 = vunpack.c.h.b16 %v1004
      %v1022 = vunpack.c.l.b16 %v1005
      %v1023 = vunpack.c.h.b16 %v1005
      %v1024 = vunpack.c.l.b16 %v1006
      %v1025 = vunpack.c.h.b16 %v1006
      %v1026 = vunpack.c.l.b16 %v1007
      %v1027 = vunpack.c.h.b16 %v1007
      %v1028 = vunpack.c.l.b16 %v1008
      %v1029 = vunpack.c.h.b16 %v1008
      %v1030 = vunpack.c.l.b16 %v1009
      %v1031 = vunpack.c.h.b16 %v1009
      %v1032 = vunpack.c.l.b16 %v1010
      %v1033 = vunpack.c.h.b16 %v1010
      %v1034 = vunpack.c.l.b16 %v1011
      %v1035 = vunpack.c.h.b16 %v1011
      %v1036 = vpack.c.b16 %v1022, %v1020
      %v1037 = vpack.c.b16 %v1023, %v1021
      %v1038 = vpack.c.b16 %v1026, %v1024
      %v1039 = vpack.c.b16 %v1027, %v1025
      %v1040 = vpack.c.b16 %v1030, %v1028
      %v1041 = vpack.c.b16 %v1031, %v1029
      %v1042 = vpack.c.b16 %v1034, %v1032
      %v1043 = vpack.c.b16 %v1035, %v1033
      %v1049 = vsel %vm702, %v1037, 0
      %v1052 = vsel %vm702, %v1039, 0
      %v1055 = vsel %vm702, %v1041, 0
      %v1058 = vsel %vm702, %v1043, 0
      %1060 = vmatpush.bf16.msra.mxu0 %v654
      %1061 = vmatpush.bf16.msra.mxu0 %v653
      %1062 = vmatpush.bf16.msra.mxu0 %v652
      %1063 = vmatpush.bf16.msra.mxu0 %v651
      %1064 = vmatpush.bf16.msra.mxu0 %v650
      %1065 = vmatpush.bf16.msra.mxu0 %v649
      %1066 = vmatpush.bf16.msra.mxu0 %v648
      %1067 = vmatpush.bf16.msra.mxu0 %v647
      %1068 = vmatmul.bf16.gmra.mxu0 %v1036
      %v1069 = vpop.f32.mrf.mxu0
      %v1070 = vadd.f32 0.0, %v1069
      %v1071 = vpop.f32.mrf.mxu0
      %v1072 = vadd.f32 0.0, %v1071
      %1073 = vmatmul.bf16.gmra.mxu0 %v1038
      %v1074 = vpop.f32.mrf.mxu0
      %v1075 = vadd.f32 0.0, %v1074
      %v1076 = vpop.f32.mrf.mxu0
      %v1077 = vadd.f32 0.0, %v1076
      %1078 = vmatmul.bf16.gmra.mxu0 %v1040
      %v1079 = vpop.f32.mrf.mxu0
      %v1080 = vadd.f32 0.0, %v1079
      %v1081 = vpop.f32.mrf.mxu0
      %v1082 = vadd.f32 0.0, %v1081
      %1083 = vmatmul.bf16.gmra.mxu0 %v1042
      %v1084 = vpop.f32.mrf.mxu0
      %v1085 = vadd.f32 0.0, %v1084
      %v1086 = vpop.f32.mrf.mxu0
      %v1087 = vadd.f32 0.0, %v1086
      %1088 = vdwg.mxu0
      %1089 = vmatpush.bf16.msra.mxu0 0
      %1090 = vmatpush.bf16.msra.mxu0 0
      %1091 = vmatpush.bf16.msra.mxu0 0
      %1092 = vmatpush.bf16.msra.mxu0 0
      %1093 = vmatpush.bf16.msra.mxu0 0
      %1094 = vmatpush.bf16.msra.mxu0 %v657
      %1095 = vmatpush.bf16.msra.mxu0 %v656
      %1096 = vmatpush.bf16.msra.mxu0 %v655
      %1097 = vmatmul.bf16.gmra.mxu0 %v1049
      %v1098 = vpop.f32.mrf.mxu0
      %v1099 = vadd.f32 %v1070, %v1098
      %v1100 = vpop.f32.mrf.mxu0
      %v1101 = vadd.f32 %v1072, %v1100
      %1102 = vmatmul.bf16.gmra.mxu0 %v1052
      %v1103 = vpop.f32.mrf.mxu0
      %v1104 = vadd.f32 %v1075, %v1103
      %v1105 = vpop.f32.mrf.mxu0
      %v1106 = vadd.f32 %v1077, %v1105
      %1107 = vmatmul.bf16.gmra.mxu0 %v1055
      %v1108 = vpop.f32.mrf.mxu0
      %v1109 = vadd.f32 %v1080, %v1108
      %v1110 = vpop.f32.mrf.mxu0
      %v1111 = vadd.f32 %v1082, %v1110
      %1112 = vmatmul.bf16.gmra.mxu0 %v1058
      %v1113 = vpop.f32.mrf.mxu0
      %v1114 = vadd.f32 %v1085, %v1113
      %v1115 = vpop.f32.mrf.mxu0
      %v1116 = vadd.f32 %v1087, %v1115
      %1117 = vdwg.mxu0
      %s1118 = scalar_lea.vmem %s3, 256
      %v1119 = vld [vmem:[%s1118] sm:$0xff]
      %v1120 = vld [vmem:[%s1118 + $0x8] sm:$0xff]
      %v1121 = vld [vmem:[%s1118 + $0x10] sm:$0xff]
      %v1122 = vld [vmem:[%s1118 + $0x18] sm:$0xff]
      %v1123 = vld [vmem:[%s1118 + $0x20] sm:$0xff]
      %v1124 = vld [vmem:[%s1118 + $0x28] sm:$0xff]
      %v1125 = vld [vmem:[%s1118 + $0x30] sm:$0xff]
      %v1126 = vld [vmem:[%s1118 + $0x38] sm:$0xff]
      %v1135 = vunpack.c.l.b16 %v1119
      %v1136 = vunpack.c.h.b16 %v1119
      %v1137 = vunpack.c.l.b16 %v1120
      %v1138 = vunpack.c.h.b16 %v1120
      %v1139 = vunpack.c.l.b16 %v1121
      %v1140 = vunpack.c.h.b16 %v1121
      %v1141 = vunpack.c.l.b16 %v1122
      %v1142 = vunpack.c.h.b16 %v1122
      %v1143 = vunpack.c.l.b16 %v1123
      %v1144 = vunpack.c.h.b16 %v1123
      %v1145 = vunpack.c.l.b16 %v1124
      %v1146 = vunpack.c.h.b16 %v1124
      %v1147 = vunpack.c.l.b16 %v1125
      %v1148 = vunpack.c.h.b16 %v1125
      %v1149 = vunpack.c.l.b16 %v1126
      %v1150 = vunpack.c.h.b16 %v1126
      %v1151 = vpack.c.b16 %v1137, %v1135
      %v1152 = vpack.c.b16 %v1138, %v1136
      %v1153 = vpack.c.b16 %v1141, %v1139
      %v1154 = vpack.c.b16 %v1142, %v1140
      %v1155 = vpack.c.b16 %v1145, %v1143
      %v1156 = vpack.c.b16 %v1146, %v1144
      %v1157 = vpack.c.b16 %v1149, %v1147
      %v1158 = vpack.c.b16 %v1150, %v1148
      %v1164 = vsel %vm702, %v1152, 0
      %v1167 = vsel %vm702, %v1154, 0
      %v1170 = vsel %vm702, %v1156, 0
      %v1173 = vsel %vm702, %v1158, 0
      %1175 = vmatpush.bf16.msra.mxu0 %v654
      %1176 = vmatpush.bf16.msra.mxu0 %v653
      %1177 = vmatpush.bf16.msra.mxu0 %v652
      %1178 = vmatpush.bf16.msra.mxu0 %v651
      %1179 = vmatpush.bf16.msra.mxu0 %v650
      %1180 = vmatpush.bf16.msra.mxu0 %v649
      %1181 = vmatpush.bf16.msra.mxu0 %v648
      %1182 = vmatpush.bf16.msra.mxu0 %v647
      %1183 = vmatmul.bf16.gmra.mxu0 %v1151
      %v1184 = vpop.f32.mrf.mxu0
      %v1185 = vadd.f32 0.0, %v1184
      %v1186 = vpop.f32.mrf.mxu0
      %v1187 = vadd.f32 0.0, %v1186
      %1188 = vmatmul.bf16.gmra.mxu0 %v1153
      %v1189 = vpop.f32.mrf.mxu0
      %v1190 = vadd.f32 0.0, %v1189
      %v1191 = vpop.f32.mrf.mxu0
      %v1192 = vadd.f32 0.0, %v1191
      %1193 = vmatmul.bf16.gmra.mxu0 %v1155
      %v1194 = vpop.f32.mrf.mxu0
      %v1195 = vadd.f32 0.0, %v1194
      %v1196 = vpop.f32.mrf.mxu0
      %v1197 = vadd.f32 0.0, %v1196
      %1198 = vmatmul.bf16.gmra.mxu0 %v1157
      %v1199 = vpop.f32.mrf.mxu0
      %v1200 = vadd.f32 0.0, %v1199
      %v1201 = vpop.f32.mrf.mxu0
      %v1202 = vadd.f32 0.0, %v1201
      %1203 = vdwg.mxu0
      %1204 = vmatpush.bf16.msra.mxu0 0
      %1205 = vmatpush.bf16.msra.mxu0 0
      %1206 = vmatpush.bf16.msra.mxu0 0
      %1207 = vmatpush.bf16.msra.mxu0 0
      %1208 = vmatpush.bf16.msra.mxu0 0
      %1209 = vmatpush.bf16.msra.mxu0 %v657
      %1210 = vmatpush.bf16.msra.mxu0 %v656
      %1211 = vmatpush.bf16.msra.mxu0 %v655
      %1212 = vmatmul.bf16.gmra.mxu0 %v1164
      %v1213 = vpop.f32.mrf.mxu0
      %v1214 = vadd.f32 %v1185, %v1213
      %v1215 = vpop.f32.mrf.mxu0
      %v1216 = vadd.f32 %v1187, %v1215
      %1217 = vmatmul.bf16.gmra.mxu0 %v1167
      %v1218 = vpop.f32.mrf.mxu0
      %v1219 = vadd.f32 %v1190, %v1218
      %v1220 = vpop.f32.mrf.mxu0
      %v1221 = vadd.f32 %v1192, %v1220
      %1222 = vmatmul.bf16.gmra.mxu0 %v1170
      %v1223 = vpop.f32.mrf.mxu0
      %v1224 = vadd.f32 %v1195, %v1223
      %v1225 = vpop.f32.mrf.mxu0
      %v1226 = vadd.f32 %v1197, %v1225
      %1227 = vmatmul.bf16.gmra.mxu0 %v1173
      %v1228 = vpop.f32.mrf.mxu0
      %v1229 = vadd.f32 %v1200, %v1228
      %v1230 = vpop.f32.mrf.mxu0
      %v1231 = vadd.f32 %v1202, %v1230
      %1232 = vdwg.mxu0
      %s1233 = scalar_lea.vmem %s3, 320
      %v1234 = vld [vmem:[%s1233] sm:$0xff]
      %v1235 = vld [vmem:[%s1233 + $0x8] sm:$0xff]
      %v1236 = vld [vmem:[%s1233 + $0x10] sm:$0xff]
      %v1237 = vld [vmem:[%s1233 + $0x18] sm:$0xff]
      %v1238 = vld [vmem:[%s1233 + $0x20] sm:$0xff]
      %v1239 = vld [vmem:[%s1233 + $0x28] sm:$0xff]
      %v1240 = vld [vmem:[%s1233 + $0x30] sm:$0xff]
      %v1241 = vld [vmem:[%s1233 + $0x38] sm:$0xff]
      %v1250 = vunpack.c.l.b16 %v1234
      %v1251 = vunpack.c.h.b16 %v1234
      %v1252 = vunpack.c.l.b16 %v1235
      %v1253 = vunpack.c.h.b16 %v1235
      %v1254 = vunpack.c.l.b16 %v1236
      %v1255 = vunpack.c.h.b16 %v1236
      %v1256 = vunpack.c.l.b16 %v1237
      %v1257 = vunpack.c.h.b16 %v1237
      %v1258 = vunpack.c.l.b16 %v1238
      %v1259 = vunpack.c.h.b16 %v1238
      %v1260 = vunpack.c.l.b16 %v1239
      %v1261 = vunpack.c.h.b16 %v1239
      %v1262 = vunpack.c.l.b16 %v1240
      %v1263 = vunpack.c.h.b16 %v1240
      %v1264 = vunpack.c.l.b16 %v1241
      %v1265 = vunpack.c.h.b16 %v1241
      %v1266 = vpack.c.b16 %v1252, %v1250
      %v1267 = vpack.c.b16 %v1253, %v1251
      %v1268 = vpack.c.b16 %v1256, %v1254
      %v1269 = vpack.c.b16 %v1257, %v1255
      %v1270 = vpack.c.b16 %v1260, %v1258
      %v1271 = vpack.c.b16 %v1261, %v1259
      %v1272 = vpack.c.b16 %v1264, %v1262
      %v1273 = vpack.c.b16 %v1265, %v1263
      %v1279 = vsel %vm702, %v1267, 0
      %v1282 = vsel %vm702, %v1269, 0
      %v1285 = vsel %vm702, %v1271, 0
      %v1288 = vsel %vm702, %v1273, 0
      %1290 = vmatpush.bf16.msra.mxu0 %v654
      %1291 = vmatpush.bf16.msra.mxu0 %v653
      %1292 = vmatpush.bf16.msra.mxu0 %v652
      %1293 = vmatpush.bf16.msra.mxu0 %v651
      %1294 = vmatpush.bf16.msra.mxu0 %v650
      %1295 = vmatpush.bf16.msra.mxu0 %v649
      %1296 = vmatpush.bf16.msra.mxu0 %v648
      %1297 = vmatpush.bf16.msra.mxu0 %v647
      %1298 = vmatmul.bf16.gmra.mxu0 %v1266
      %v1299 = vpop.f32.mrf.mxu0
      %v1300 = vadd.f32 0.0, %v1299
      %v1301 = vpop.f32.mrf.mxu0
      %v1302 = vadd.f32 0.0, %v1301
      %1303 = vmatmul.bf16.gmra.mxu0 %v1268
      %v1304 = vpop.f32.mrf.mxu0
      %v1305 = vadd.f32 0.0, %v1304
      %v1306 = vpop.f32.mrf.mxu0
      %v1307 = vadd.f32 0.0, %v1306
      %1308 = vmatmul.bf16.gmra.mxu0 %v1270
      %v1309 = vpop.f32.mrf.mxu0
      %v1310 = vadd.f32 0.0, %v1309
      %v1311 = vpop.f32.mrf.mxu0
      %v1312 = vadd.f32 0.0, %v1311
      %1313 = vmatmul.bf16.gmra.mxu0 %v1272
      %v1314 = vpop.f32.mrf.mxu0
      %v1315 = vadd.f32 0.0, %v1314
      %v1316 = vpop.f32.mrf.mxu0
      %v1317 = vadd.f32 0.0, %v1316
      %1318 = vdwg.mxu0
      %1319 = vmatpush.bf16.msra.mxu0 0
      %1320 = vmatpush.bf16.msra.mxu0 0
      %1321 = vmatpush.bf16.msra.mxu0 0
      %1322 = vmatpush.bf16.msra.mxu0 0
      %1323 = vmatpush.bf16.msra.mxu0 0
      %1324 = vmatpush.bf16.msra.mxu0 %v657
      %1325 = vmatpush.bf16.msra.mxu0 %v656
      %1326 = vmatpush.bf16.msra.mxu0 %v655
      %1327 = vmatmul.bf16.gmra.mxu0 %v1279
      %v1328 = vpop.f32.mrf.mxu0
      %v1329 = vadd.f32 %v1300, %v1328
      %v1330 = vpop.f32.mrf.mxu0
      %v1331 = vadd.f32 %v1302, %v1330
      %1332 = vmatmul.bf16.gmra.mxu0 %v1282
      %v1333 = vpop.f32.mrf.mxu0
      %v1334 = vadd.f32 %v1305, %v1333
      %v1335 = vpop.f32.mrf.mxu0
      %v1336 = vadd.f32 %v1307, %v1335
      %1337 = vmatmul.bf16.gmra.mxu0 %v1285
      %v1338 = vpop.f32.mrf.mxu0
      %v1339 = vadd.f32 %v1310, %v1338
      %v1340 = vpop.f32.mrf.mxu0
      %v1341 = vadd.f32 %v1312, %v1340
      %1342 = vmatmul.bf16.gmra.mxu0 %v1288
      %v1343 = vpop.f32.mrf.mxu0
      %v1344 = vadd.f32 %v1315, %v1343
      %v1345 = vpop.f32.mrf.mxu0
      %v1346 = vadd.f32 %v1317, %v1345
      %1347 = vdwg.mxu0
      %s1348 = scalar_lea.vmem %s3, 384
      %v1349 = vld [vmem:[%s1348] sm:$0xff]
      %v1350 = vld [vmem:[%s1348 + $0x8] sm:$0xff]
      %v1351 = vld [vmem:[%s1348 + $0x10] sm:$0xff]
      %v1352 = vld [vmem:[%s1348 + $0x18] sm:$0xff]
      %v1353 = vld [vmem:[%s1348 + $0x20] sm:$0xff]
      %v1354 = vld [vmem:[%s1348 + $0x28] sm:$0xff]
      %v1355 = vld [vmem:[%s1348 + $0x30] sm:$0xff]
      %v1356 = vld [vmem:[%s1348 + $0x38] sm:$0xff]
      %v1365 = vunpack.c.l.b16 %v1349
      %v1366 = vunpack.c.h.b16 %v1349
      %v1367 = vunpack.c.l.b16 %v1350
      %v1368 = vunpack.c.h.b16 %v1350
      %v1369 = vunpack.c.l.b16 %v1351
      %v1370 = vunpack.c.h.b16 %v1351
      %v1371 = vunpack.c.l.b16 %v1352
      %v1372 = vunpack.c.h.b16 %v1352
      %v1373 = vunpack.c.l.b16 %v1353
      %v1374 = vunpack.c.h.b16 %v1353
      %v1375 = vunpack.c.l.b16 %v1354
      %v1376 = vunpack.c.h.b16 %v1354
      %v1377 = vunpack.c.l.b16 %v1355
      %v1378 = vunpack.c.h.b16 %v1355
      %v1379 = vunpack.c.l.b16 %v1356
      %v1380 = vunpack.c.h.b16 %v1356
      %v1381 = vpack.c.b16 %v1367, %v1365
      %v1382 = vpack.c.b16 %v1368, %v1366
      %v1383 = vpack.c.b16 %v1371, %v1369
      %v1384 = vpack.c.b16 %v1372, %v1370
      %v1385 = vpack.c.b16 %v1375, %v1373
      %v1386 = vpack.c.b16 %v1376, %v1374
      %v1387 = vpack.c.b16 %v1379, %v1377
      %v1388 = vpack.c.b16 %v1380, %v1378
      %v1394 = vsel %vm702, %v1382, 0
      %v1397 = vsel %vm702, %v1384, 0
      %v1400 = vsel %vm702, %v1386, 0
      %v1403 = vsel %vm702, %v1388, 0
      %1405 = vmatpush.bf16.msra.mxu0 %v654
      %1406 = vmatpush.bf16.msra.mxu0 %v653
      %1407 = vmatpush.bf16.msra.mxu0 %v652
      %1408 = vmatpush.bf16.msra.mxu0 %v651
      %1409 = vmatpush.bf16.msra.mxu0 %v650
      %1410 = vmatpush.bf16.msra.mxu0 %v649
      %1411 = vmatpush.bf16.msra.mxu0 %v648
      %1412 = vmatpush.bf16.msra.mxu0 %v647
      %1413 = vmatmul.bf16.gmra.mxu0 %v1381
      %v1414 = vpop.f32.mrf.mxu0
      %v1415 = vadd.f32 0.0, %v1414
      %v1416 = vpop.f32.mrf.mxu0
      %v1417 = vadd.f32 0.0, %v1416
      %1418 = vmatmul.bf16.gmra.mxu0 %v1383
      %v1419 = vpop.f32.mrf.mxu0
      %v1420 = vadd.f32 0.0, %v1419
      %v1421 = vpop.f32.mrf.mxu0
      %v1422 = vadd.f32 0.0, %v1421
      %1423 = vmatmul.bf16.gmra.mxu0 %v1385
      %v1424 = vpop.f32.mrf.mxu0
      %v1425 = vadd.f32 0.0, %v1424
      %v1426 = vpop.f32.mrf.mxu0
      %v1427 = vadd.f32 0.0, %v1426
      %1428 = vmatmul.bf16.gmra.mxu0 %v1387
      %v1429 = vpop.f32.mrf.mxu0
      %v1430 = vadd.f32 0.0, %v1429
      %v1431 = vpop.f32.mrf.mxu0
      %v1432 = vadd.f32 0.0, %v1431
      %1433 = vdwg.mxu0
      %1434 = vmatpush.bf16.msra.mxu0 0
      %1435 = vmatpush.bf16.msra.mxu0 0
      %1436 = vmatpush.bf16.msra.mxu0 0
      %1437 = vmatpush.bf16.msra.mxu0 0
      %1438 = vmatpush.bf16.msra.mxu0 0
      %1439 = vmatpush.bf16.msra.mxu0 %v657
      %1440 = vmatpush.bf16.msra.mxu0 %v656
      %1441 = vmatpush.bf16.msra.mxu0 %v655
      %1442 = vmatmul.bf16.gmra.mxu0 %v1394
      %v1443 = vpop.f32.mrf.mxu0
      %v1444 = vadd.f32 %v1415, %v1443
      %v1445 = vpop.f32.mrf.mxu0
      %v1446 = vadd.f32 %v1417, %v1445
      %1447 = vmatmul.bf16.gmra.mxu0 %v1397
      %v1448 = vpop.f32.mrf.mxu0
      %v1449 = vadd.f32 %v1420, %v1448
      %v1450 = vpop.f32.mrf.mxu0
      %v1451 = vadd.f32 %v1422, %v1450
      %1452 = vmatmul.bf16.gmra.mxu0 %v1400
      %v1453 = vpop.f32.mrf.mxu0
      %v1454 = vadd.f32 %v1425, %v1453
      %v1455 = vpop.f32.mrf.mxu0
      %v1456 = vadd.f32 %v1427, %v1455
      %1457 = vmatmul.bf16.gmra.mxu0 %v1403
      %v1458 = vpop.f32.mrf.mxu0
      %v1459 = vadd.f32 %v1430, %v1458
      %v1460 = vpop.f32.mrf.mxu0
      %v1461 = vadd.f32 %v1432, %v1460
      %1462 = vdwg.mxu0
      %s1463 = scalar_lea.vmem %s3, 448
      %v1464 = vld [vmem:[%s1463] sm:$0xff]
      %v1465 = vld [vmem:[%s1463 + $0x8] sm:$0xff]
      %v1466 = vld [vmem:[%s1463 + $0x10] sm:$0xff]
      %v1467 = vld [vmem:[%s1463 + $0x18] sm:$0xff]
      %v1468 = vld [vmem:[%s1463 + $0x20] sm:$0xff]
      %v1469 = vld [vmem:[%s1463 + $0x28] sm:$0xff]
      %v1470 = vld [vmem:[%s1463 + $0x30] sm:$0xff]
      %v1471 = vld [vmem:[%s1463 + $0x38] sm:$0xff]
      %v1480 = vunpack.c.l.b16 %v1464
      %v1481 = vunpack.c.h.b16 %v1464
      %v1482 = vunpack.c.l.b16 %v1465
      %v1483 = vunpack.c.h.b16 %v1465
      %v1484 = vunpack.c.l.b16 %v1466
      %v1485 = vunpack.c.h.b16 %v1466
      %v1486 = vunpack.c.l.b16 %v1467
      %v1487 = vunpack.c.h.b16 %v1467
      %v1488 = vunpack.c.l.b16 %v1468
      %v1489 = vunpack.c.h.b16 %v1468
      %v1490 = vunpack.c.l.b16 %v1469
      %v1491 = vunpack.c.h.b16 %v1469
      %v1492 = vunpack.c.l.b16 %v1470
      %v1493 = vunpack.c.h.b16 %v1470
      %v1494 = vunpack.c.l.b16 %v1471
      %v1495 = vunpack.c.h.b16 %v1471
      %v1496 = vpack.c.b16 %v1482, %v1480
      %v1497 = vpack.c.b16 %v1483, %v1481
      %v1498 = vpack.c.b16 %v1486, %v1484
      %v1499 = vpack.c.b16 %v1487, %v1485
      %v1500 = vpack.c.b16 %v1490, %v1488
      %v1501 = vpack.c.b16 %v1491, %v1489
      %v1502 = vpack.c.b16 %v1494, %v1492
      %v1503 = vpack.c.b16 %v1495, %v1493
      %v1509 = vsel %vm702, %v1497, 0
      %v1512 = vsel %vm702, %v1499, 0
      %v1515 = vsel %vm702, %v1501, 0
      %v1518 = vsel %vm702, %v1503, 0
      %1520 = vmatpush.bf16.msra.mxu0 %v654
      %1521 = vmatpush.bf16.msra.mxu0 %v653
      %1522 = vmatpush.bf16.msra.mxu0 %v652
      %1523 = vmatpush.bf16.msra.mxu0 %v651
      %1524 = vmatpush.bf16.msra.mxu0 %v650
      %1525 = vmatpush.bf16.msra.mxu0 %v649
      %1526 = vmatpush.bf16.msra.mxu0 %v648
      %1527 = vmatpush.bf16.msra.mxu0 %v647
      %1528 = vmatmul.bf16.gmra.mxu0 %v1496
      %v1529 = vpop.f32.mrf.mxu0
      %v1530 = vadd.f32 0.0, %v1529
      %v1531 = vpop.f32.mrf.mxu0
      %v1532 = vadd.f32 0.0, %v1531
      %1533 = vmatmul.bf16.gmra.mxu0 %v1498
      %v1534 = vpop.f32.mrf.mxu0
      %v1535 = vadd.f32 0.0, %v1534
      %v1536 = vpop.f32.mrf.mxu0
      %v1537 = vadd.f32 0.0, %v1536
      %1538 = vmatmul.bf16.gmra.mxu0 %v1500
      %v1539 = vpop.f32.mrf.mxu0
      %v1540 = vadd.f32 0.0, %v1539
      %v1541 = vpop.f32.mrf.mxu0
      %v1542 = vadd.f32 0.0, %v1541
      %1543 = vmatmul.bf16.gmra.mxu0 %v1502
      %v1544 = vpop.f32.mrf.mxu0
      %v1545 = vadd.f32 0.0, %v1544
      %v1546 = vpop.f32.mrf.mxu0
      %v1547 = vadd.f32 0.0, %v1546
      %1548 = vdwg.mxu0
      %1549 = vmatpush.bf16.msra.mxu0 0
      %1550 = vmatpush.bf16.msra.mxu0 0
      %1551 = vmatpush.bf16.msra.mxu0 0
      %1552 = vmatpush.bf16.msra.mxu0 0
      %1553 = vmatpush.bf16.msra.mxu0 0
      %1554 = vmatpush.bf16.msra.mxu0 %v657
      %1555 = vmatpush.bf16.msra.mxu0 %v656
      %1556 = vmatpush.bf16.msra.mxu0 %v655
      %1557 = vmatmul.bf16.gmra.mxu0 %v1509
      %v1558 = vpop.f32.mrf.mxu0
      %v1559 = vadd.f32 %v1530, %v1558
      %v1560 = vpop.f32.mrf.mxu0
      %v1561 = vadd.f32 %v1532, %v1560
      %1562 = vmatmul.bf16.gmra.mxu0 %v1512
      %v1563 = vpop.f32.mrf.mxu0
      %v1564 = vadd.f32 %v1535, %v1563
      %v1565 = vpop.f32.mrf.mxu0
      %v1566 = vadd.f32 %v1537, %v1565
      %1567 = vmatmul.bf16.gmra.mxu0 %v1515
      %v1568 = vpop.f32.mrf.mxu0
      %v1569 = vadd.f32 %v1540, %v1568
      %v1570 = vpop.f32.mrf.mxu0
      %v1571 = vadd.f32 %v1542, %v1570
      %1572 = vmatmul.bf16.gmra.mxu0 %v1518
      %v1573 = vpop.f32.mrf.mxu0
      %v1574 = vadd.f32 %v1545, %v1573
      %v1575 = vpop.f32.mrf.mxu0
      %v1576 = vadd.f32 %v1547, %v1575
      %1577 = vdwg.mxu0
      %s1578 = scalar_lea.vmem %s3, 512
      %v1579 = vld [vmem:[%s1578] sm:$0xff]
      %v1580 = vld [vmem:[%s1578 + $0x8] sm:$0xff]
      %v1581 = vld [vmem:[%s1578 + $0x10] sm:$0xff]
      %v1582 = vld [vmem:[%s1578 + $0x18] sm:$0xff]
      %v1583 = vld [vmem:[%s1578 + $0x20] sm:$0xff]
      %v1584 = vld [vmem:[%s1578 + $0x28] sm:$0xff]
      %v1585 = vld [vmem:[%s1578 + $0x30] sm:$0xff]
      %v1586 = vld [vmem:[%s1578 + $0x38] sm:$0xff]
      %v1595 = vunpack.c.l.b16 %v1579
      %v1596 = vunpack.c.h.b16 %v1579
      %v1597 = vunpack.c.l.b16 %v1580
      %v1598 = vunpack.c.h.b16 %v1580
      %v1599 = vunpack.c.l.b16 %v1581
      %v1600 = vunpack.c.h.b16 %v1581
      %v1601 = vunpack.c.l.b16 %v1582
      %v1602 = vunpack.c.h.b16 %v1582
      %v1603 = vunpack.c.l.b16 %v1583
      %v1604 = vunpack.c.h.b16 %v1583
      %v1605 = vunpack.c.l.b16 %v1584
      %v1606 = vunpack.c.h.b16 %v1584
      %v1607 = vunpack.c.l.b16 %v1585
      %v1608 = vunpack.c.h.b16 %v1585
      %v1609 = vunpack.c.l.b16 %v1586
      %v1610 = vunpack.c.h.b16 %v1586
      %v1611 = vpack.c.b16 %v1597, %v1595
      %v1612 = vpack.c.b16 %v1598, %v1596
      %v1613 = vpack.c.b16 %v1601, %v1599
      %v1614 = vpack.c.b16 %v1602, %v1600
      %v1615 = vpack.c.b16 %v1605, %v1603
      %v1616 = vpack.c.b16 %v1606, %v1604
      %v1617 = vpack.c.b16 %v1609, %v1607
      %v1618 = vpack.c.b16 %v1610, %v1608
      %v1624 = vsel %vm702, %v1612, 0
      %v1627 = vsel %vm702, %v1614, 0
      %v1630 = vsel %vm702, %v1616, 0
      %v1633 = vsel %vm702, %v1618, 0
      %1635 = vmatpush.bf16.msra.mxu0 %v654
      %1636 = vmatpush.bf16.msra.mxu0 %v653
      %1637 = vmatpush.bf16.msra.mxu0 %v652
      %1638 = vmatpush.bf16.msra.mxu0 %v651
      %1639 = vmatpush.bf16.msra.mxu0 %v650
      %1640 = vmatpush.bf16.msra.mxu0 %v649
      %1641 = vmatpush.bf16.msra.mxu0 %v648
      %1642 = vmatpush.bf16.msra.mxu0 %v647
      %1643 = vmatmul.bf16.gmra.mxu0 %v1611
      %v1644 = vpop.f32.mrf.mxu0
      %v1645 = vadd.f32 0.0, %v1644
      %v1646 = vpop.f32.mrf.mxu0
      %v1647 = vadd.f32 0.0, %v1646
      %1648 = vmatmul.bf16.gmra.mxu0 %v1613
      %v1649 = vpop.f32.mrf.mxu0
      %v1650 = vadd.f32 0.0, %v1649
      %v1651 = vpop.f32.mrf.mxu0
      %v1652 = vadd.f32 0.0, %v1651
      %1653 = vmatmul.bf16.gmra.mxu0 %v1615
      %v1654 = vpop.f32.mrf.mxu0
      %v1655 = vadd.f32 0.0, %v1654
      %v1656 = vpop.f32.mrf.mxu0
      %v1657 = vadd.f32 0.0, %v1656
      %1658 = vmatmul.bf16.gmra.mxu0 %v1617
      %v1659 = vpop.f32.mrf.mxu0
      %v1660 = vadd.f32 0.0, %v1659
      %v1661 = vpop.f32.mrf.mxu0
      %v1662 = vadd.f32 0.0, %v1661
      %1663 = vdwg.mxu0
      %1664 = vmatpush.bf16.msra.mxu0 0
      %1665 = vmatpush.bf16.msra.mxu0 0
      %1666 = vmatpush.bf16.msra.mxu0 0
      %1667 = vmatpush.bf16.msra.mxu0 0
      %1668 = vmatpush.bf16.msra.mxu0 0
      %1669 = vmatpush.bf16.msra.mxu0 %v657
      %1670 = vmatpush.bf16.msra.mxu0 %v656
      %1671 = vmatpush.bf16.msra.mxu0 %v655
      %1672 = vmatmul.bf16.gmra.mxu0 %v1624
      %v1673 = vpop.f32.mrf.mxu0
      %v1674 = vadd.f32 %v1645, %v1673
      %v1675 = vpop.f32.mrf.mxu0
      %v1676 = vadd.f32 %v1647, %v1675
      %1677 = vmatmul.bf16.gmra.mxu0 %v1627
      %v1678 = vpop.f32.mrf.mxu0
      %v1679 = vadd.f32 %v1650, %v1678
      %v1680 = vpop.f32.mrf.mxu0
      %v1681 = vadd.f32 %v1652, %v1680
      %1682 = vmatmul.bf16.gmra.mxu0 %v1630
      %v1683 = vpop.f32.mrf.mxu0
      %v1684 = vadd.f32 %v1655, %v1683
      %v1685 = vpop.f32.mrf.mxu0
      %v1686 = vadd.f32 %v1657, %v1685
      %1687 = vmatmul.bf16.gmra.mxu0 %v1633
      %v1688 = vpop.f32.mrf.mxu0
      %v1689 = vadd.f32 %v1660, %v1688
      %v1690 = vpop.f32.mrf.mxu0
      %v1691 = vadd.f32 %v1662, %v1690
      %1692 = vdwg.mxu0
      %1701 = vrot.lane.b32.xlu0 %v869, 16
      %v1702 = vpop.permute.xlu0 %1701
      %1703 = vrot.lane.b32.xlu0 %v871, 16
      %v1704 = vpop.permute.xlu0 %1703
      %1705 = vrot.lane.b32.xlu0 %v874, 16
      %v1706 = vpop.permute.xlu0 %1705
      %1707 = vrot.lane.b32.xlu0 %v876, 16
      %v1708 = vpop.permute.xlu0 %1707
      %1709 = vrot.lane.b32.xlu0 %v879, 16
      %v1710 = vpop.permute.xlu0 %1709
      %1711 = vrot.lane.b32.xlu0 %v881, 16
      %v1712 = vpop.permute.xlu0 %1711
      %1713 = vrot.lane.b32.xlu0 %v884, 16
      %v1714 = vpop.permute.xlu0 %1713
      %1715 = vrot.lane.b32.xlu0 %v886, 16
      %v1716 = vpop.permute.xlu0 %1715
      %1733 = vrot.lane.b32.xlu0 %v984, 32
      %v1734 = vpop.permute.xlu0 %1733
      %1735 = vrot.lane.b32.xlu0 %v986, 32
      %v1736 = vpop.permute.xlu0 %1735
      %1737 = vrot.lane.b32.xlu0 %v989, 32
      %v1738 = vpop.permute.xlu0 %1737
      %1739 = vrot.lane.b32.xlu0 %v991, 32
      %v1740 = vpop.permute.xlu0 %1739
      %1741 = vrot.lane.b32.xlu0 %v994, 32
      %v1742 = vpop.permute.xlu0 %1741
      %1743 = vrot.lane.b32.xlu0 %v996, 32
      %v1744 = vpop.permute.xlu0 %1743
      %1745 = vrot.lane.b32.xlu0 %v999, 32
      %v1746 = vpop.permute.xlu0 %1745
      %1747 = vrot.lane.b32.xlu0 %v1001, 32
      %v1748 = vpop.permute.xlu0 %1747
      %1765 = vrot.lane.b32.xlu0 %v1099, 48
      %v1766 = vpop.permute.xlu0 %1765
      %1767 = vrot.lane.b32.xlu0 %v1101, 48
      %v1768 = vpop.permute.xlu0 %1767
      %1769 = vrot.lane.b32.xlu0 %v1104, 48
      %v1770 = vpop.permute.xlu0 %1769
      %1771 = vrot.lane.b32.xlu0 %v1106, 48
      %v1772 = vpop.permute.xlu0 %1771
      %1773 = vrot.lane.b32.xlu0 %v1109, 48
      %v1774 = vpop.permute.xlu0 %1773
      %1775 = vrot.lane.b32.xlu0 %v1111, 48
      %v1776 = vpop.permute.xlu0 %1775
      %1777 = vrot.lane.b32.xlu0 %v1114, 48
      %v1778 = vpop.permute.xlu0 %1777
      %1779 = vrot.lane.b32.xlu0 %v1116, 48
      %v1780 = vpop.permute.xlu0 %1779
      %1797 = vrot.lane.b32.xlu0 %v1214, 64
      %v1798 = vpop.permute.xlu0 %1797
      %1799 = vrot.lane.b32.xlu0 %v1216, 64
      %v1800 = vpop.permute.xlu0 %1799
      %1801 = vrot.lane.b32.xlu0 %v1219, 64
      %v1802 = vpop.permute.xlu0 %1801
      %1803 = vrot.lane.b32.xlu0 %v1221, 64
      %v1804 = vpop.permute.xlu0 %1803
      %1805 = vrot.lane.b32.xlu0 %v1224, 64
      %v1806 = vpop.permute.xlu0 %1805
      %1807 = vrot.lane.b32.xlu0 %v1226, 64
      %v1808 = vpop.permute.xlu0 %1807
      %1809 = vrot.lane.b32.xlu0 %v1229, 64
      %v1810 = vpop.permute.xlu0 %1809
      %1811 = vrot.lane.b32.xlu0 %v1231, 64
      %v1812 = vpop.permute.xlu0 %1811
      %1829 = vrot.lane.b32.xlu0 %v1329, 80
      %v1830 = vpop.permute.xlu0 %1829
      %1831 = vrot.lane.b32.xlu0 %v1331, 80
      %v1832 = vpop.permute.xlu0 %1831
      %1833 = vrot.lane.b32.xlu0 %v1334, 80
      %v1834 = vpop.permute.xlu0 %1833
      %1835 = vrot.lane.b32.xlu0 %v1336, 80
      %v1836 = vpop.permute.xlu0 %1835
      %1837 = vrot.lane.b32.xlu0 %v1339, 80
      %v1838 = vpop.permute.xlu0 %1837
      %1839 = vrot.lane.b32.xlu0 %v1341, 80
      %v1840 = vpop.permute.xlu0 %1839
      %1841 = vrot.lane.b32.xlu0 %v1344, 80
      %v1842 = vpop.permute.xlu0 %1841
      %1843 = vrot.lane.b32.xlu0 %v1346, 80
      %v1844 = vpop.permute.xlu0 %1843
      %1861 = vrot.lane.b32.xlu0 %v1444, 96
      %v1862 = vpop.permute.xlu0 %1861
      %1863 = vrot.lane.b32.xlu0 %v1446, 96
      %v1864 = vpop.permute.xlu0 %1863
      %1865 = vrot.lane.b32.xlu0 %v1449, 96
      %v1866 = vpop.permute.xlu0 %1865
      %1867 = vrot.lane.b32.xlu0 %v1451, 96
      %v1868 = vpop.permute.xlu0 %1867
      %1869 = vrot.lane.b32.xlu0 %v1454, 96
      %v1870 = vpop.permute.xlu0 %1869
      %1871 = vrot.lane.b32.xlu0 %v1456, 96
      %v1872 = vpop.permute.xlu0 %1871
      %1873 = vrot.lane.b32.xlu0 %v1459, 96
      %v1874 = vpop.permute.xlu0 %1873
      %1875 = vrot.lane.b32.xlu0 %v1461, 96
      %v1876 = vpop.permute.xlu0 %1875
      %1893 = vrot.lane.b32.xlu0 %v1559, 112
      %v1894 = vpop.permute.xlu0 %1893
      %1895 = vrot.lane.b32.xlu0 %v1561, 112
      %v1896 = vpop.permute.xlu0 %1895
      %1897 = vrot.lane.b32.xlu0 %v1564, 112
      %v1898 = vpop.permute.xlu0 %1897
      %1899 = vrot.lane.b32.xlu0 %v1566, 112
      %v1900 = vpop.permute.xlu0 %1899
      %1901 = vrot.lane.b32.xlu0 %v1569, 112
      %v1902 = vpop.permute.xlu0 %1901
      %1903 = vrot.lane.b32.xlu0 %v1571, 112
      %v1904 = vpop.permute.xlu0 %1903
      %1905 = vrot.lane.b32.xlu0 %v1574, 112
      %v1906 = vpop.permute.xlu0 %1905
      %1907 = vrot.lane.b32.xlu0 %v1576, 112
      %v1908 = vpop.permute.xlu0 %1907
      %vm1917 = vcmask 130048
      %v1918 = vsel %vm1917, %v754, %v1702
      %v1919 = vsel %vm1917, %v756, %v1704
      %v1920 = vsel %vm1917, %v759, %v1706
      %v1921 = vsel %vm1917, %v761, %v1708
      %v1922 = vsel %vm1917, %v764, %v1710
      %v1923 = vsel %vm1917, %v766, %v1712
      %v1924 = vsel %vm1917, %v769, %v1714
      %v1925 = vsel %vm1917, %v771, %v1716
      %v1926 = vsel %vm483, %v1918, %v1734
      %v1927 = vsel %vm483, %v1919, %v1736
      %v1928 = vsel %vm483, %v1920, %v1738
      %v1929 = vsel %vm483, %v1921, %v1740
      %v1930 = vsel %vm483, %v1922, %v1742
      %v1931 = vsel %vm483, %v1923, %v1744
      %v1932 = vsel %vm483, %v1924, %v1746
      %v1933 = vsel %vm483, %v1925, %v1748
      %v1934 = vsel %vm702, %v1926, %v1766
      %v1935 = vsel %vm702, %v1927, %v1768
      %v1936 = vsel %vm702, %v1928, %v1770
      %v1937 = vsel %vm702, %v1929, %v1772
      %v1938 = vsel %vm702, %v1930, %v1774
      %v1939 = vsel %vm702, %v1931, %v1776
      %v1940 = vsel %vm702, %v1932, %v1778
      %v1941 = vsel %vm702, %v1933, %v1780
      %vm1942 = vcmask 523264
      %v1943 = vsel %vm1942, %v1934, %v1798
      %v1944 = vsel %vm1942, %v1935, %v1800
      %v1945 = vsel %vm1942, %v1936, %v1802
      %v1946 = vsel %vm1942, %v1937, %v1804
      %v1947 = vsel %vm1942, %v1938, %v1806
      %v1948 = vsel %vm1942, %v1939, %v1808
      %v1949 = vsel %vm1942, %v1940, %v1810
      %v1950 = vsel %vm1942, %v1941, %v1812
      %vm1951 = vcmask 654336
      %v1952 = vsel %vm1951, %v1943, %v1830
      %v1953 = vsel %vm1951, %v1944, %v1832
      %v1954 = vsel %vm1951, %v1945, %v1834
      %v1955 = vsel %vm1951, %v1946, %v1836
      %v1956 = vsel %vm1951, %v1947, %v1838
      %v1957 = vsel %vm1951, %v1948, %v1840
      %v1958 = vsel %vm1951, %v1949, %v1842
      %v1959 = vsel %vm1951, %v1950, %v1844
      %vm1960 = vcmask 785408
      %v1961 = vsel %vm1960, %v1952, %v1862
      %v1962 = vsel %vm1960, %v1953, %v1864
      %v1963 = vsel %vm1960, %v1954, %v1866
      %v1964 = vsel %vm1960, %v1955, %v1868
      %v1965 = vsel %vm1960, %v1956, %v1870
      %v1966 = vsel %vm1960, %v1957, %v1872
      %v1967 = vsel %vm1960, %v1958, %v1874
      %v1968 = vsel %vm1960, %v1959, %v1876
      %vm1969 = vcmask 916480
      %v1970 = vsel %vm1969, %v1961, %v1894
      %v1971 = vsel %vm1969, %v1962, %v1896
      %v1972 = vsel %vm1969, %v1963, %v1898
      %v1973 = vsel %vm1969, %v1964, %v1900
      %v1974 = vsel %vm1969, %v1965, %v1902
      %v1975 = vsel %vm1969, %v1966, %v1904
      %v1976 = vsel %vm1969, %v1967, %v1906
      %v1977 = vsel %vm1969, %v1968, %v1908
      %v1978 = vpack.c.bf16 %v1971, %v1970
      %v1979 = vpack.c.bf16 %v1676, %v1674
      %v1980 = vpack.c.bf16 %v1973, %v1972
      %v1981 = vpack.c.bf16 %v1681, %v1679
      %v1982 = vpack.c.bf16 %v1975, %v1974
      %v1983 = vpack.c.bf16 %v1686, %v1684
      %v1984 = vpack.c.bf16 %v1977, %v1976
      %v1985 = vpack.c.bf16 %v1691, %v1689
      %v1986 = vld [vmem:[%s4] sm:$0xf]
      %v1987 = vld [vmem:[%s4 + $0x4] sm:$0xf]
      %v1988 = vld [vmem:[%s4 + $0x8] sm:$0xf]
      %v1989 = vld [vmem:[%s4 + $0xc] sm:$0xf]
      %v1990 = vld [vmem:[%s4 + $0x10] sm:$0xf]
      %v1991 = vld [vmem:[%s4 + $0x14] sm:$0xf]
      %v1992 = vld [vmem:[%s4 + $0x18] sm:$0xf]
      %v1993 = vld [vmem:[%s4 + $0x1c] sm:$0xf]
      %v1994 = vld [vmem:[%s4 + $0x20] sm:$0xf]
      %v1995 = vld [vmem:[%s4 + $0x24] sm:$0xf]
      %v1996 = vld [vmem:[%s4 + $0x28] sm:$0xf]
      %v1997 = vld [vmem:[%s4 + $0x2c] sm:$0xf]
      %v1998 = vld [vmem:[%s4 + $0x30] sm:$0xf]
      %v1999 = vld [vmem:[%s4 + $0x34] sm:$0xf]
      %v2000 = vld [vmem:[%s4 + $0x38] sm:$0xf]
      %v2001 = vld [vmem:[%s4 + $0x3c] sm:$0xf]
      %v2002 = vld [vmem:[%s4 + $0x40] sm:$0xf]
      %v2003 = vld [vmem:[%s4 + $0x44] sm:$0xf]
      %v2004 = vld [vmem:[%s5] sm:$0x1]
      %v2006 = vperm.slane %v2004, 0
      %v2026 = vunpack.c.l.b16 %v1986
      %v2027 = vunpack.c.l.b16 %v1987
      %v2028 = vunpack.c.l.b16 %v1988
      %v2029 = vunpack.c.l.b16 %v1989
      %v2030 = vunpack.c.l.b16 %v1990
      %v2031 = vunpack.c.l.b16 %v1991
      %v2032 = vunpack.c.l.b16 %v1992
      %v2033 = vunpack.c.l.b16 %v1993
      %v2034 = vunpack.c.l.b16 %v1994
      %v2035 = vunpack.c.l.b16 %v1995
      %v2036 = vunpack.c.l.b16 %v1996
      %v2037 = vunpack.c.l.b16 %v1997
      %v2038 = vunpack.c.l.b16 %v1998
      %v2039 = vunpack.c.l.b16 %v1999
      %v2040 = vunpack.c.l.b16 %v2000
      %v2041 = vunpack.c.l.b16 %v2001
      %v2042 = vunpack.c.l.b16 %v2002
      %v2043 = vunpack.c.l.b16 %v2003
      %v2044 = vpack.c.b16 %v2027, %v2026
      %v2045 = vpack.c.b16 %v2029, %v2028
      %v2046 = vpack.c.b16 %v2031, %v2030
      %v2047 = vpack.c.b16 %v2033, %v2032
      %v2048 = vpack.c.b16 %v2035, %v2034
      %v2049 = vpack.c.b16 %v2037, %v2036
      %v2050 = vpack.c.b16 %v2039, %v2038
      %v2051 = vpack.c.b16 %v2041, %v2040
      %v2052 = vpack.c.b16 %v2043, %v2042
      %v2063 = vsel %vm1917, %v1979, 0
      %v2066 = vsel %vm1917, %v1981, 0
      %v2069 = vsel %vm1917, %v1983, 0
      %v2072 = vsel %vm1917, %v1985, 0
      %2074 = vmatpush.bf16.msra.mxu0 %v2051
      %2075 = vmatpush.bf16.msra.mxu0 %v2050
      %2076 = vmatpush.bf16.msra.mxu0 %v2049
      %2077 = vmatpush.bf16.msra.mxu0 %v2048
      %2078 = vmatpush.bf16.msra.mxu0 %v2047
      %2079 = vmatpush.bf16.msra.mxu0 %v2046
      %2080 = vmatpush.bf16.msra.mxu0 %v2045
      %2081 = vmatpush.bf16.msra.mxu0 %v2044
      %2082 = vmatmul.bf16.gmra.mxu0 %v1978
      %v2083 = vpop.f32.mrf.mxu0
      %v2084 = vadd.f32 %v2006, %v2083
      %v2085 = vpop.f32.mrf.mxu0
      %v2086 = vadd.f32 %v2006, %v2085
      %2087 = vmatmul.bf16.gmra.mxu0 %v1980
      %v2088 = vpop.f32.mrf.mxu0
      %v2089 = vadd.f32 %v2006, %v2088
      %v2090 = vpop.f32.mrf.mxu0
      %v2091 = vadd.f32 %v2006, %v2090
      %2092 = vmatmul.bf16.gmra.mxu0 %v1982
      %v2093 = vpop.f32.mrf.mxu0
      %v2094 = vadd.f32 %v2006, %v2093
      %v2095 = vpop.f32.mrf.mxu0
      %v2096 = vadd.f32 %v2006, %v2095
      %2097 = vmatmul.bf16.gmra.mxu0 %v1984
      %v2098 = vpop.f32.mrf.mxu0
      %v2099 = vadd.f32 %v2006, %v2098
      %v2100 = vpop.f32.mrf.mxu0
      %v2101 = vadd.f32 %v2006, %v2100
      %2102 = vdwg.mxu0
      %2103 = vmatpush.bf16.msra.mxu0 0
      %2104 = vmatpush.bf16.msra.mxu0 0
      %2105 = vmatpush.bf16.msra.mxu0 0
      %2106 = vmatpush.bf16.msra.mxu0 0
      %2107 = vmatpush.bf16.msra.mxu0 0
      %2108 = vmatpush.bf16.msra.mxu0 0
      %2109 = vmatpush.bf16.msra.mxu0 0
      %2110 = vmatpush.bf16.msra.mxu0 %v2052
      %2111 = vmatmul.bf16.gmra.mxu0 %v2063
      %v2112 = vpop.f32.mrf.mxu0
      %v2113 = vadd.f32 %v2084, %v2112
      %v2114 = vpop.f32.mrf.mxu0
      %v2115 = vadd.f32 %v2086, %v2114
      %2116 = vmatmul.bf16.gmra.mxu0 %v2066
      %v2117 = vpop.f32.mrf.mxu0
      %v2118 = vadd.f32 %v2089, %v2117
      %v2119 = vpop.f32.mrf.mxu0
      %v2120 = vadd.f32 %v2091, %v2119
      %2121 = vmatmul.bf16.gmra.mxu0 %v2069
      %v2122 = vpop.f32.mrf.mxu0
      %v2123 = vadd.f32 %v2094, %v2122
      %v2124 = vpop.f32.mrf.mxu0
      %v2125 = vadd.f32 %v2096, %v2124
      %2126 = vmatmul.bf16.gmra.mxu0 %v2072
      %v2127 = vpop.f32.mrf.mxu0
      %v2128 = vadd.f32 %v2099, %v2127
      %v2129 = vpop.f32.mrf.mxu0
      %v2130 = vadd.f32 %v2101, %v2129
      %2131 = vdwg.mxu0
      %vm2132 = vcmp.gt.f32.partialorder %v2113, 0.0
      %vm2133 = vcmp.gt.f32.partialorder %v2115, 0.0
      %vm2134 = vcmp.gt.f32.partialorder %v2118, 0.0
      %vm2135 = vcmp.gt.f32.partialorder %v2120, 0.0
      %vm2136 = vcmp.gt.f32.partialorder %v2123, 0.0
      %vm2137 = vcmp.gt.f32.partialorder %v2125, 0.0
      %vm2138 = vcmp.gt.f32.partialorder %v2128, 0.0
      %vm2139 = vcmp.gt.f32.partialorder %v2130, 0.0
      %v2140 = vmul.f32 %v2113, 0.01
      %v2141 = vmul.f32 %v2115, 0.01
      %v2142 = vmul.f32 %v2118, 0.01
      %v2143 = vmul.f32 %v2120, 0.01
      %v2144 = vmul.f32 %v2123, 0.01
      %v2145 = vmul.f32 %v2125, 0.01
      %v2146 = vmul.f32 %v2128, 0.01
      %v2147 = vmul.f32 %v2130, 0.01
      %v2148 = vsel %vm2132, %v2113, %v2140
      %v2149 = vsel %vm2133, %v2115, %v2141
      %v2150 = vsel %vm2134, %v2118, %v2142
      %v2151 = vsel %vm2135, %v2120, %v2143
      %v2152 = vsel %vm2136, %v2123, %v2144
      %v2153 = vsel %vm2137, %v2125, %v2145
      %v2154 = vsel %vm2138, %v2128, %v2146
      %v2155 = vsel %vm2139, %v2130, %v2147
      %v2156 = vpack.c.bf16 %v2149, %v2148
      %v2157 = vpack.c.bf16 %v2151, %v2150
      %v2158 = vpack.c.bf16 %v2153, %v2152
      %v2159 = vpack.c.bf16 %v2155, %v2154
      %v2160 = vld [vmem:[%s6] sm:$0xf]
      %v2161 = vld [vmem:[%s6 + $0x4] sm:$0xf]
      %v2164 = vunpack.c.l.b16 %v2160
      %v2165 = vunpack.c.l.b16 %v2161
      %v2166 = vpack.c.b16 %v2165, %v2164
      %v2168 = vsel %vm1942, %v2166, 0
      %2170 = vmatpush.bf16.msra.mxu0 0
      %2171 = vmatpush.bf16.msra.mxu0 0
      %2172 = vmatpush.bf16.msra.mxu0 0
      %2173 = vmatpush.bf16.msra.mxu0 0
      %2174 = vmatpush.bf16.msra.mxu0 %v2159
      %2175 = vmatpush.bf16.msra.mxu0 %v2158
      %2176 = vmatpush.bf16.msra.mxu0 %v2157
      %2177 = vmatpush.bf16.msra.mxu0 %v2156
      %2178 = vmatmul.bf16.gmra.mxu0 %v2168
      %v2179 = vpop.f32.mrf.mxu0
      %v2180 = vadd.f32 0.0, %v2179
      %v2181 = vpop.f32.mrf.mxu0
      %v2182 = vadd.f32 0.0, %v2181
      %2183 = vdwg.mxu0
      %s2184 = scalar_lea.vmem %s6, 8
      %v2185 = vld [vmem:[%s2184] sm:$0xf]
      %v2186 = vld [vmem:[%s2184 + $0x4] sm:$0xf]
      %v2189 = vunpack.c.l.b16 %v2185
      %v2190 = vunpack.c.l.b16 %v2186
      %v2191 = vpack.c.b16 %v2190, %v2189
      %v2193 = vsel %vm1942, %v2191, 0
      %2195 = vmatpush.bf16.msra.mxu0 0
      %2196 = vmatpush.bf16.msra.mxu0 0
      %2197 = vmatpush.bf16.msra.mxu0 0
      %2198 = vmatpush.bf16.msra.mxu0 0
      %2199 = vmatpush.bf16.msra.mxu0 %v2159
      %2200 = vmatpush.bf16.msra.mxu0 %v2158
      %2201 = vmatpush.bf16.msra.mxu0 %v2157
      %2202 = vmatpush.bf16.msra.mxu0 %v2156
      %2203 = vmatmul.bf16.gmra.mxu0 %v2193
      %v2204 = vpop.f32.mrf.mxu0
      %v2205 = vadd.f32 0.0, %v2204
      %v2206 = vpop.f32.mrf.mxu0
      %v2207 = vadd.f32 0.0, %v2206
      %2208 = vdwg.mxu0
      %s2209 = scalar_lea.vmem %s6, 16
      %v2210 = vld [vmem:[%s2209] sm:$0xf]
      %v2211 = vld [vmem:[%s2209 + $0x4] sm:$0xf]
      %v2214 = vunpack.c.l.b16 %v2210
      %v2215 = vunpack.c.l.b16 %v2211
      %v2216 = vpack.c.b16 %v2215, %v2214
      %v2218 = vsel %vm1942, %v2216, 0
      %2220 = vmatpush.bf16.msra.mxu0 0
      %2221 = vmatpush.bf16.msra.mxu0 0
      %2222 = vmatpush.bf16.msra.mxu0 0
      %2223 = vmatpush.bf16.msra.mxu0 0
      %2224 = vmatpush.bf16.msra.mxu0 %v2159
      %2225 = vmatpush.bf16.msra.mxu0 %v2158
      %2226 = vmatpush.bf16.msra.mxu0 %v2157
      %2227 = vmatpush.bf16.msra.mxu0 %v2156
      %2228 = vmatmul.bf16.gmra.mxu0 %v2218
      %v2229 = vpop.f32.mrf.mxu0
      %v2230 = vadd.f32 0.0, %v2229
      %v2231 = vpop.f32.mrf.mxu0
      %v2232 = vadd.f32 0.0, %v2231
      %2233 = vdwg.mxu0
      %s2234 = scalar_lea.vmem %s6, 24
      %v2235 = vld [vmem:[%s2234] sm:$0xf]
      %v2236 = vld [vmem:[%s2234 + $0x4] sm:$0xf]
      %v2239 = vunpack.c.l.b16 %v2235
      %v2240 = vunpack.c.l.b16 %v2236
      %v2241 = vpack.c.b16 %v2240, %v2239
      %v2243 = vsel %vm1942, %v2241, 0
      %2245 = vmatpush.bf16.msra.mxu0 0
      %2246 = vmatpush.bf16.msra.mxu0 0
      %2247 = vmatpush.bf16.msra.mxu0 0
      %2248 = vmatpush.bf16.msra.mxu0 0
      %2249 = vmatpush.bf16.msra.mxu0 %v2159
      %2250 = vmatpush.bf16.msra.mxu0 %v2158
      %2251 = vmatpush.bf16.msra.mxu0 %v2157
      %2252 = vmatpush.bf16.msra.mxu0 %v2156
      %2253 = vmatmul.bf16.gmra.mxu0 %v2243
      %v2254 = vpop.f32.mrf.mxu0
      %v2255 = vadd.f32 0.0, %v2254
      %v2256 = vpop.f32.mrf.mxu0
      %v2257 = vadd.f32 0.0, %v2256
      %2258 = vdwg.mxu0
      %s2259 = scalar_lea.vmem %s6, 32
      %v2260 = vld [vmem:[%s2259] sm:$0xf]
      %v2261 = vld [vmem:[%s2259 + $0x4] sm:$0xf]
      %v2264 = vunpack.c.l.b16 %v2260
      %v2265 = vunpack.c.l.b16 %v2261
      %v2266 = vpack.c.b16 %v2265, %v2264
      %v2268 = vsel %vm1942, %v2266, 0
      %2270 = vmatpush.bf16.msra.mxu0 0
      %2271 = vmatpush.bf16.msra.mxu0 0
      %2272 = vmatpush.bf16.msra.mxu0 0
      %2273 = vmatpush.bf16.msra.mxu0 0
      %2274 = vmatpush.bf16.msra.mxu0 %v2159
      %2275 = vmatpush.bf16.msra.mxu0 %v2158
      %2276 = vmatpush.bf16.msra.mxu0 %v2157
      %2277 = vmatpush.bf16.msra.mxu0 %v2156
      %2278 = vmatmul.bf16.gmra.mxu0 %v2268
      %v2279 = vpop.f32.mrf.mxu0
      %v2280 = vadd.f32 0.0, %v2279
      %v2281 = vpop.f32.mrf.mxu0
      %v2282 = vadd.f32 0.0, %v2281
      %2283 = vdwg.mxu0
      %s2284 = scalar_lea.vmem %s6, 40
      %v2285 = vld [vmem:[%s2284] sm:$0xf]
      %v2286 = vld [vmem:[%s2284 + $0x4] sm:$0xf]
      %v2289 = vunpack.c.l.b16 %v2285
      %v2290 = vunpack.c.l.b16 %v2286
      %v2291 = vpack.c.b16 %v2290, %v2289
      %v2293 = vsel %vm1942, %v2291, 0
      %2295 = vmatpush.bf16.msra.mxu0 0
      %2296 = vmatpush.bf16.msra.mxu0 0
      %2297 = vmatpush.bf16.msra.mxu0 0
      %2298 = vmatpush.bf16.msra.mxu0 0
      %2299 = vmatpush.bf16.msra.mxu0 %v2159
      %2300 = vmatpush.bf16.msra.mxu0 %v2158
      %2301 = vmatpush.bf16.msra.mxu0 %v2157
      %2302 = vmatpush.bf16.msra.mxu0 %v2156
      %2303 = vmatmul.bf16.gmra.mxu0 %v2293
      %v2304 = vpop.f32.mrf.mxu0
      %v2305 = vadd.f32 0.0, %v2304
      %v2306 = vpop.f32.mrf.mxu0
      %v2307 = vadd.f32 0.0, %v2306
      %2308 = vdwg.mxu0
      %s2309 = scalar_lea.vmem %s6, 48
      %v2310 = vld [vmem:[%s2309] sm:$0xf]
      %v2311 = vld [vmem:[%s2309 + $0x4] sm:$0xf]
      %v2314 = vunpack.c.l.b16 %v2310
      %v2315 = vunpack.c.l.b16 %v2311
      %v2316 = vpack.c.b16 %v2315, %v2314
      %v2318 = vsel %vm1942, %v2316, 0
      %2320 = vmatpush.bf16.msra.mxu0 0
      %2321 = vmatpush.bf16.msra.mxu0 0
      %2322 = vmatpush.bf16.msra.mxu0 0
      %2323 = vmatpush.bf16.msra.mxu0 0
      %2324 = vmatpush.bf16.msra.mxu0 %v2159
      %2325 = vmatpush.bf16.msra.mxu0 %v2158
      %2326 = vmatpush.bf16.msra.mxu0 %v2157
      %2327 = vmatpush.bf16.msra.mxu0 %v2156
      %2328 = vmatmul.bf16.gmra.mxu0 %v2318
      %v2329 = vpop.f32.mrf.mxu0
      %v2330 = vadd.f32 0.0, %v2329
      %v2331 = vpop.f32.mrf.mxu0
      %v2332 = vadd.f32 0.0, %v2331
      %2333 = vdwg.mxu0
      %s2334 = scalar_lea.vmem %s6, 56
      %v2335 = vld [vmem:[%s2334] sm:$0xf]
      %v2336 = vld [vmem:[%s2334 + $0x4] sm:$0xf]
      %v2339 = vunpack.c.l.b16 %v2335
      %v2340 = vunpack.c.l.b16 %v2336
      %v2341 = vpack.c.b16 %v2340, %v2339
      %v2343 = vsel %vm1942, %v2341, 0
      %2345 = vmatpush.bf16.msra.mxu0 0
      %2346 = vmatpush.bf16.msra.mxu0 0
      %2347 = vmatpush.bf16.msra.mxu0 0
      %2348 = vmatpush.bf16.msra.mxu0 0
      %2349 = vmatpush.bf16.msra.mxu0 %v2159
      %2350 = vmatpush.bf16.msra.mxu0 %v2158
      %2351 = vmatpush.bf16.msra.mxu0 %v2157
      %2352 = vmatpush.bf16.msra.mxu0 %v2156
      %2353 = vmatmul.bf16.gmra.mxu0 %v2343
      %v2354 = vpop.f32.mrf.mxu0
      %v2355 = vadd.f32 0.0, %v2354
      %v2356 = vpop.f32.mrf.mxu0
      %v2357 = vadd.f32 0.0, %v2356
      %2358 = vdwg.mxu0
      %s2359 = scalar_lea.vmem %s6, 64
      %v2360 = vld [vmem:[%s2359] sm:$0xf]
      %v2361 = vld [vmem:[%s2359 + $0x4] sm:$0xf]
      %v2364 = vunpack.c.l.b16 %v2360
      %v2365 = vunpack.c.l.b16 %v2361
      %v2366 = vpack.c.b16 %v2365, %v2364
      %v2368 = vsel %vm1942, %v2366, 0
      %2370 = vmatpush.bf16.msra.mxu0 0
      %2371 = vmatpush.bf16.msra.mxu0 0
      %2372 = vmatpush.bf16.msra.mxu0 0
      %2373 = vmatpush.bf16.msra.mxu0 0
      %2374 = vmatpush.bf16.msra.mxu0 %v2159
      %2375 = vmatpush.bf16.msra.mxu0 %v2158
      %2376 = vmatpush.bf16.msra.mxu0 %v2157
      %2377 = vmatpush.bf16.msra.mxu0 %v2156
      %2378 = vmatmul.bf16.gmra.mxu0 %v2368
      %v2379 = vpop.f32.mrf.mxu0
      %v2380 = vadd.f32 0.0, %v2379
      %v2381 = vpop.f32.mrf.mxu0
      %v2382 = vadd.f32 0.0, %v2381
      %2383 = vdwg.mxu0
      %2386 = vrot.lane.b32.xlu0 %v2205, 32
      %v2387 = vpop.permute.xlu0 %2386
      %2388 = vrot.lane.b32.xlu0 %v2207, 32
      %v2389 = vpop.permute.xlu0 %2388
      %2394 = vrot.lane.b32.xlu0 %v2230, 64
      %v2395 = vpop.permute.xlu0 %2394
      %2396 = vrot.lane.b32.xlu0 %v2232, 64
      %v2397 = vpop.permute.xlu0 %2396
      %2402 = vrot.lane.b32.xlu0 %v2255, 96
      %v2403 = vpop.permute.xlu0 %2402
      %2404 = vrot.lane.b32.xlu0 %v2257, 96
      %v2405 = vpop.permute.xlu0 %2404
      %2410 = vrot.lane.b32.xlu0 %v2305, 32
      %v2411 = vpop.permute.xlu0 %2410
      %2412 = vrot.lane.b32.xlu0 %v2307, 32
      %v2413 = vpop.permute.xlu0 %2412
      %2418 = vrot.lane.b32.xlu0 %v2330, 64
      %v2419 = vpop.permute.xlu0 %2418
      %2420 = vrot.lane.b32.xlu0 %v2332, 64
      %v2421 = vpop.permute.xlu0 %2420
      %2426 = vrot.lane.b32.xlu0 %v2355, 96
      %v2427 = vpop.permute.xlu0 %2426
      %2428 = vrot.lane.b32.xlu0 %v2357, 96
      %v2429 = vpop.permute.xlu0 %2428
      %v2432 = vsel %vm483, %v2180, %v2387
      %v2433 = vsel %vm483, %v2182, %v2389
      %v2434 = vsel %vm1942, %v2432, %v2395
      %v2435 = vsel %vm1942, %v2433, %v2397
      %v2436 = vsel %vm1960, %v2434, %v2403
      %v2437 = vsel %vm1960, %v2435, %v2405
      %v2438 = vsel %vm483, %v2280, %v2411
      %v2439 = vsel %vm483, %v2282, %v2413
      %v2440 = vsel %vm1942, %v2438, %v2419
      %v2441 = vsel %vm1942, %v2439, %v2421
      %v2442 = vsel %vm1960, %v2440, %v2427
      %v2443 = vsel %vm1960, %v2441, %v2429
      %v2444 = vpack.c.bf16 %v2437, %v2436
      %v2445 = vpack.c.bf16 %v2443, %v2442
      %v2446 = vpack.c.bf16 %v2382, %v2380
      %v2447 = vld [vmem:[%s7] sm:$0xf]
      %v2448 = vld [vmem:[%s7 + $0x4] sm:$0xf]
      %v2449 = vld [vmem:[%s7 + $0x8] sm:$0xf]
      %v2450 = vld [vmem:[%s7 + $0xc] sm:$0xf]
      %v2451 = vld [vmem:[%s7 + $0x10] sm:$0xf]
      %v2452 = vld [vmem:[%s7 + $0x14] sm:$0xf]
      %v2453 = vld [vmem:[%s7 + $0x18] sm:$0xf]
      %v2454 = vld [vmem:[%s7 + $0x1c] sm:$0xf]
      %v2455 = vld [vmem:[%s7 + $0x20] sm:$0xf]
      %v2456 = vld [vmem:[%s7 + $0x24] sm:$0xf]
      %v2457 = vld [vmem:[%s7 + $0x28] sm:$0xf]
      %v2458 = vld [vmem:[%s7 + $0x2c] sm:$0xf]
      %v2459 = vld [vmem:[%s7 + $0x30] sm:$0xf]
      %v2460 = vld [vmem:[%s7 + $0x34] sm:$0xf]
      %v2461 = vld [vmem:[%s7 + $0x38] sm:$0xf]
      %v2462 = vld [vmem:[%s7 + $0x3c] sm:$0xf]
      %v2463 = vld [vmem:[%s7 + $0x40] sm:$0xf]
      %v2464 = vld [vmem:[%s7 + $0x44] sm:$0xf]
      %v2465 = vld [vmem:[%s7 + $0x48] sm:$0xf]
      %v2466 = vld [vmem:[%s7 + $0x4c] sm:$0xf]
      %v2467 = vld [vmem:[%s7 + $0x50] sm:$0xf]
      %v2468 = vld [vmem:[%s7 + $0x54] sm:$0xf]
      %v2469 = vld [vmem:[%s7 + $0x58] sm:$0xf]
      %v2470 = vld [vmem:[%s7 + $0x5c] sm:$0xf]
      %v2471 = vld [vmem:[%s7 + $0x60] sm:$0xf]
      %v2472 = vld [vmem:[%s7 + $0x64] sm:$0xf]
      %v2473 = vld [vmem:[%s7 + $0x68] sm:$0xf]
      %v2474 = vld [vmem:[%s7 + $0x6c] sm:$0xf]
      %v2475 = vld [vmem:[%s7 + $0x70] sm:$0xf]
      %v2476 = vld [vmem:[%s7 + $0x74] sm:$0xf]
      %v2477 = vld [vmem:[%s7 + $0x78] sm:$0xf]
      %v2478 = vld [vmem:[%s7 + $0x7c] sm:$0xf]
      %v2479 = vld [vmem:[%s7 + $0x80] sm:$0xf]
      %v2480 = vld [vmem:[%s7 + $0x84] sm:$0xf]
      %v2481 = vld [vmem:[%s7 + $0x88] sm:$0xf]
      %v2482 = vld [vmem:[%s7 + $0x8c] sm:$0xf]
      %v2483 = vld [vmem:[%s8] sm:$0x1]
      %v2485 = vperm.slane %v2483, 0
      %v2523 = vunpack.c.l.b16 %v2447
      %v2524 = vunpack.c.l.b16 %v2448
      %v2525 = vunpack.c.l.b16 %v2449
      %v2526 = vunpack.c.l.b16 %v2450
      %v2527 = vunpack.c.l.b16 %v2451
      %v2528 = vunpack.c.l.b16 %v2452
      %v2529 = vunpack.c.l.b16 %v2453
      %v2530 = vunpack.c.l.b16 %v2454
      %v2531 = vunpack.c.l.b16 %v2455
      %v2532 = vunpack.c.l.b16 %v2456
      %v2533 = vunpack.c.l.b16 %v2457
      %v2534 = vunpack.c.l.b16 %v2458
      %v2535 = vunpack.c.l.b16 %v2459
      %v2536 = vunpack.c.l.b16 %v2460
      %v2537 = vunpack.c.l.b16 %v2461
      %v2538 = vunpack.c.l.b16 %v2462
      %v2539 = vunpack.c.l.b16 %v2463
      %v2540 = vunpack.c.l.b16 %v2464
      %v2541 = vunpack.c.l.b16 %v2465
      %v2542 = vunpack.c.l.b16 %v2466
      %v2543 = vunpack.c.l.b16 %v2467
      %v2544 = vunpack.c.l.b16 %v2468
      %v2545 = vunpack.c.l.b16 %v2469
      %v2546 = vunpack.c.l.b16 %v2470
      %v2547 = vunpack.c.l.b16 %v2471
      %v2548 = vunpack.c.l.b16 %v2472
      %v2549 = vunpack.c.l.b16 %v2473
      %v2550 = vunpack.c.l.b16 %v2474
      %v2551 = vunpack.c.l.b16 %v2475
      %v2552 = vunpack.c.l.b16 %v2476
      %v2553 = vunpack.c.l.b16 %v2477
      %v2554 = vunpack.c.l.b16 %v2478
      %v2555 = vunpack.c.l.b16 %v2479
      %v2556 = vunpack.c.l.b16 %v2480
      %v2557 = vunpack.c.l.b16 %v2481
      %v2558 = vunpack.c.l.b16 %v2482
      %v2559 = vpack.c.b16 %v2524, %v2523
      %v2560 = vpack.c.b16 %v2526, %v2525
      %v2561 = vpack.c.b16 %v2528, %v2527
      %v2562 = vpack.c.b16 %v2530, %v2529
      %v2563 = vpack.c.b16 %v2532, %v2531
      %v2564 = vpack.c.b16 %v2534, %v2533
      %v2565 = vpack.c.b16 %v2536, %v2535
      %v2566 = vpack.c.b16 %v2538, %v2537
      %v2567 = vpack.c.b16 %v2540, %v2539
      %v2568 = vpack.c.b16 %v2542, %v2541
      %v2569 = vpack.c.b16 %v2544, %v2543
      %v2570 = vpack.c.b16 %v2546, %v2545
      %v2571 = vpack.c.b16 %v2548, %v2547
      %v2572 = vpack.c.b16 %v2550, %v2549
      %v2573 = vpack.c.b16 %v2552, %v2551
      %v2574 = vpack.c.b16 %v2554, %v2553
      %v2575 = vpack.c.b16 %v2556, %v2555
      %v2576 = vpack.c.b16 %v2558, %v2557
      %v2596 = vsel %vm483, %v2446, 0
      %2598 = vmatpush.bf16.msra.mxu0 %v2566
      %2599 = vmatpush.bf16.msra.mxu0 %v2565
      %2600 = vmatpush.bf16.msra.mxu0 %v2564
      %2601 = vmatpush.bf16.msra.mxu0 %v2563
      %2602 = vmatpush.bf16.msra.mxu0 %v2562
      %2603 = vmatpush.bf16.msra.mxu0 %v2561
      %2604 = vmatpush.bf16.msra.mxu0 %v2560
      %2605 = vmatpush.bf16.msra.mxu0 %v2559
      %2606 = vmatmul.bf16.gmra.mxu0 %v2444
      %v2607 = vpop.f32.mrf.mxu0
      %v2608 = vadd.f32 %v2485, %v2607
      %v2609 = vpop.f32.mrf.mxu0
      %v2610 = vadd.f32 %v2485, %v2609
      %2611 = vdwg.mxu0
      %2612 = vmatpush.bf16.msra.mxu0 %v2574
      %2613 = vmatpush.bf16.msra.mxu0 %v2573
      %2614 = vmatpush.bf16.msra.mxu0 %v2572
      %2615 = vmatpush.bf16.msra.mxu0 %v2571
      %2616 = vmatpush.bf16.msra.mxu0 %v2570
      %2617 = vmatpush.bf16.msra.mxu0 %v2569
      %2618 = vmatpush.bf16.msra.mxu0 %v2568
      %2619 = vmatpush.bf16.msra.mxu0 %v2567
      %2620 = vmatmul.bf16.gmra.mxu0 %v2445
      %v2621 = vpop.f32.mrf.mxu0
      %v2622 = vadd.f32 %v2608, %v2621
      %v2623 = vpop.f32.mrf.mxu0
      %v2624 = vadd.f32 %v2610, %v2623
      %2625 = vdwg.mxu0
      %2626 = vmatpush.bf16.msra.mxu0 0
      %2627 = vmatpush.bf16.msra.mxu0 0
      %2628 = vmatpush.bf16.msra.mxu0 0
      %2629 = vmatpush.bf16.msra.mxu0 0
      %2630 = vmatpush.bf16.msra.mxu0 0
      %2631 = vmatpush.bf16.msra.mxu0 0
      %2632 = vmatpush.bf16.msra.mxu0 %v2576
      %2633 = vmatpush.bf16.msra.mxu0 %v2575
      %2634 = vmatmul.bf16.gmra.mxu0 %v2596
      %v2635 = vpop.f32.mrf.mxu0
      %v2636 = vadd.f32 %v2622, %v2635
      %v2637 = vpop.f32.mrf.mxu0
      %v2638 = vadd.f32 %v2624, %v2637
      %2639 = vdwg.mxu0
      %vm2640 = vcmp.gt.f32.partialorder %v2636, 0.0
      %vm2641 = vcmp.gt.f32.partialorder %v2638, 0.0
      %v2642 = vmul.f32 %v2636, 0.01
      %v2643 = vmul.f32 %v2638, 0.01
      %v2644 = vsel %vm2640, %v2636, %v2642
      %v2645 = vsel %vm2641, %v2638, %v2643
      %v2646 = vld [vmem:[%s9] sm:$0xff]
      %v2647 = vld [vmem:[%s9 + $0x8] sm:$0xff]
      %v2648 = vmul.f32 %v2644, %v2646
      %v2649 = vmul.f32 %v2645, %v2647
      %v2650 = vsel %vm1942, %v2648, 0.0
      %v2651 = vsel %vm1942, %v2649, 0.0
      %v2652 = vadd.f32 %v2650, %v2651
      %2653 = vadd.xlane.f32.xlu0 %v2652
      %v2654 = vpop.xlane.xlu0 %2653
      %v2655 = vrot.slane %v2654, 4
      %v2656 = vadd.f32 %v2654, %v2655
      %v2657 = vrot.slane %v2656, 2
      %v2658 = vadd.f32 %v2656, %v2657
      %v2659 = vrot.slane %v2658, 1
      %v2660 = vadd.f32 %v2658, %v2659
      %s2661 = vtos %v2660
      %v2662 = vld [vmem:[#allocation2] sm:$0x1]
      %v2663 = vstv %s2661
      %v2664 = vadd.f32 %v2663, %v2662
      %2666 = vset.pattern.permute.xlu0 0
      %2667 = vperm.xlu0 %2666, %v2664
      %v2668 = vpop.permute.xlu0 %2667
      %v2670 = vperm.slane %v2668, 0
      %2671 = vst [vmem:[%s384] sm:$0x1] %v2670
      %p2672 = scmp.lt.s32.totalorder %s24, 1
      %s2673 = scalar_select %p2672, %s24, 1
      %s2674 = scalar_lea.vmem %s11, %s2673
      // Predicated region
      $region65: #{discriminator1_forward.1} parent=63 // pred_check
        %p2675 = pneg %p278
      $region66: #{discriminator1_forward.1} parent=63 // pred_check_branch
        %2677 = sbr.rel (%p2675) target = $region68
      $region67: #{discriminator1_forward.1} parent=63 // pred_region
        _
      $region68: #{discriminator1_forward.1} parent=63 // pred_fallthru
        _
    $region64: #{discriminator1_forward.1} parent=5 // pred_fallthru
      _
    %p2678 = scmp.le.s32.totalorder 2, %s19
    // Predicated region
    $region69: #{discriminator1_forward.1} parent=5 // pred_check
      %p2679 = pneg %p2678
    $region70: #{discriminator1_forward.1} parent=5 // pred_check_branch
      %2681 = sbr.rel (%p2679) target = $region72
    $region71: #{discriminator1_forward.1} parent=5 // pred_region
      %s2682 = ssub.s32 %s19, 2
      // Predicated region
      $region73: #{discriminator1_forward.1} parent=71 // pred_check
        %p2683 = pneg %p284
      $region74: #{discriminator1_forward.1} parent=71 // pred_check_branch
        %2685 = sbr.rel (%p2683) target = $region76
      $region75: #{discriminator1_forward.1} parent=71 // pred_region
        %p2686 = scmp.lt.s32.totalorder %s25, 1
        %s2687 = scalar_select %p2686, %s25, 1
        %s2688 = scalar_lea.vmem %s11, %s2687
      $region76: #{discriminator1_forward.1} parent=71 // pred_fallthru
        _
    $region72: #{discriminator1_forward.1} parent=5 // pred_fallthru
      _
  $region6: #{discriminator1_forward.1} parent=0 // loop_footer
    %s23 = sadd.s32 1, %s19
  $region7: #{discriminator1_forward.1} parent=0 // loop_footer_branch
    %18 = sbr.rel target = $region3
  $region8: #{discriminator1_forward.1} parent=0 // loop_exit
    _

</llo_original>
